<compile_context>
chip_gen: v5e
topology: v5e:2x2
jax: 0.10.0
libtpu: 0.0.40
codegen_flags: <defaults>
</compile_context>

<pallas_src>
import jax
import jax.numpy as jnp
from jax import lax
from jax.experimental import pallas as pl
from jax.experimental.pallas import tpu as pltpu

EPS = 1e-5


def _gelu_exact(x):
    # nn.GELU() default = exact erf formulation
    return 0.5 * x * (1.0 + lax.erf(x / jnp.sqrt(jnp.float32(2.0))))


def _make_fused_kernel(N, H, W, Cin, Cout, use_res, has_sc, mxu_dtype):
    Hp, Wp = H + 2, W + 2
    NH = N * H
    NHW = N * H * W
    WCo = W * Cout
    inv_nhw = 1.0 / float(NHW)

    def zero_ring(pad, C):
        # zero only the 1-pixel halo ring; the interior is overwritten right after
        pad[:, 0:1, :] = jnp.zeros((N, 1, Wp * C), jnp.float32)
        pad[:, Hp - 1:Hp, :] = jnp.zeros((N, 1, Wp * C), jnp.float32)
        pad[:, :, 0:C] = jnp.zeros((N, Hp, C), jnp.float32)
        pad[:, :, (W + 1) * C:(W + 2) * C] = jnp.zeros((N, Hp, C), jnp.float32)

    def conv(pad, b_ref, C):
        # pad: (N, Hp, Wp*C) padded slab; b_ref: (3, Wp*C, W*Cout) banded weights.
        # One matmul per kh row tap; output is lane-dense (NH, W*Cout) in f32.
        acc = None
        for kh in range(3):
            rows = pad[:, kh:kh + H, :].reshape(NH, Wp * C).astype(mxu_dtype)
            d = jnp.dot(rows, b_ref[kh], preferred_element_type=jnp.float32)
            acc = d if acc is None else acc + d
        return acc

    def bn_gelu(acc, g_ref, be_ref, em_ref, emt_ref):
        # One-pass stats over acc: per-lane sum & sum-of-squares (single traversal), then
        # fold the W lane groups to per-channel with a tiny constant matmul, and broadcast
        # scale/shift back to lane-dense with its transpose. All math stays f32.
        col_s = jnp.sum(acc, axis=0, keepdims=True)                      # (1, W*Cout)
        col_q = jnp.sum(acc * acc, axis=0, keepdims=True)                # (1, W*Cout)
        ch_s = jnp.dot(col_s, em_ref[...], preferred_element_type=jnp.float32)   # (1, Cout)
        ch_q = jnp.dot(col_q, em_ref[...], preferred_element_type=jnp.float32)   # (1, Cout)
        mean = ch_s * inv_nhw
        var = ch_q * inv_nhw - mean * mean                               # biased training var
        scale = g_ref[...] * lax.rsqrt(var + EPS)
        shift = be_ref[...] - mean * scale
        scale_d = jnp.dot(scale, emt_ref[...], preferred_element_type=jnp.float32)  # (1,W*Cout)
        shift_d = jnp.dot(shift, emt_ref[...], preferred_element_type=jnp.float32)
        return _gelu_exact(acc * scale_d + shift_d)                      # (NH, W*Cout)

    def kernel(*refs):
        if has_sc:
            (x_ref, b1_ref, g1_ref, be1_ref, b2_ref, g2_ref, be2_ref,
             em_ref, emt_ref, bsc_ref, bscb_ref, out_ref, xpad, h1pad) = refs
        else:
            (x_ref, b1_ref, g1_ref, be1_ref, b2_ref, g2_ref, be2_ref,
             em_ref, emt_ref, out_ref, xpad, h1pad) = refs

        # ---- stage 1: halo ring in VMEM, conv1 -> BN -> GELU (conv bias dropped: exact) ----
        zero_ring(xpad, Cin)
        xpad[:, 1:H + 1, Cin:(W + 1) * Cin] = x_ref[...]
        h1 = bn_gelu(conv(xpad, b1_ref, Cin), g1_ref, be1_ref, em_ref, emt_ref)

        # ---- stage 2: h1 stays in VMEM (no HBM round-trip) ---------------------------------
        zero_ring(h1pad, Cout)
        h1pad[:, 1:H + 1, Cout:(W + 1) * Cout] = h1.reshape(N, H, WCo)
        y = bn_gelu(conv(h1pad, b2_ref, Cout), g2_ref, be2_ref, em_ref, emt_ref)

        # ---- fused residual / shortcut (lane-dense) ----------------------------------------
        if use_res:
            x_dense = x_ref[...].reshape(NH, W * Cin)
            if has_sc:
                sc = jnp.dot(x_dense.astype(mxu_dtype), bsc_ref[...],
                             preferred_element_type=jnp.float32) + bscb_ref[...]
                y = y + sc
            else:
                y = y + x_dense

        out_ref[...] = y                                                 # unmasked 128-lane vst

    return kernel


def _build_conv_block(wt, W):
    """HWIO (3,3,Cin,Cout) -> (3, (W+2)*Cin, W*Cout) banded matrices for lane-dense conv.

    B[kh, wp*Cin+ci, w*Cout+co] = wt[kh, wp-w, ci, co] when 0 <= wp-w < 3, else 0.
    """
    Cin, Cout = wt.shape[2], wt.shape[3]
    Wp = W + 2
    kw = jnp.arange(Wp)[:, None] - jnp.arange(W)[None, :]                # (Wp, W)
    valid = ((kw >= 0) & (kw < 3)).astype(wt.dtype)
    g = wt[:, jnp.clip(kw, 0, 2), :, :]                                  # (3, Wp, W, Cin, Cout)
    g = g * valid[None, :, :, None, None]
    g = jnp.transpose(g, (0, 1, 3, 2, 4))                                # (3, Wp, Cin, W, Cout)
    return g.reshape(3, Wp * Cin, W * Cout)


def _vmem():
    return pl.BlockSpec(memory_space=pltpu.MemorySpace.VMEM)


def residual_block_forward(params, x_nchw, use_res=True, mxu_dtype=jnp.float32):
    """Pallas implementation of ResidualBlock.forward. Input/output are NCHW."""
    x = jnp.transpose(x_nchw, (0, 2, 3, 1)).astype(jnp.float32)          # NCHW -> NHWC
    N, H, W, Cin = x.shape
    Cout = params["w1"].shape[-1]
    has_sc = bool(use_res and ("wsc" in params))

    x_in = x.reshape(N, H, W * Cin)                                      # lane-dense rows
    b1 = _build_conv_block(params["w1"], W).astype(mxu_dtype)
    b2 = _build_conv_block(params["w2"], W).astype(mxu_dtype)
    emat = jnp.tile(jnp.eye(Cout, dtype=jnp.float32), (W, 1))            # (W*Cout, Cout) fold
    ematt = emat.T                                                        # (Cout, W*Cout) bcast

    inputs = [x_in, b1, params["g1"], params["be1"], b2, params["g2"], params["be2"],
              emat, ematt]
    if has_sc:
        bsc_blk = jnp.einsum("wv,io->wivo", jnp.eye(W, dtype=jnp.float32),
                             params["wsc"]).reshape(W * Cin, W * Cout).astype(mxu_dtype)
        bsc_dense = jnp.tile(params["bsc"].reshape(1, Cout), (1, W))     # (1, W*Cout)
        inputs += [bsc_blk, bsc_dense]

    NHW = N * H * W
    flops = 2 * NHW * 9 * Cin * Cout + 2 * NHW * 9 * Cout * Cout
    if has_sc:
        flops += 2 * NHW * Cin * Cout
    bytes_accessed = int(sum(int(v.size) * v.dtype.itemsize for v in inputs)) + NHW * Cout * 4

    kernel = _make_fused_kernel(N, H, W, Cin, Cout, use_res, has_sc, mxu_dtype)
    out = pl.pallas_call(
        kernel,
        out_shape=jax.ShapeDtypeStruct((N * H, W * Cout), jnp.float32),  # lane-dense output
        in_specs=[_vmem()] * len(inputs),
        out_specs=_vmem(),
        scratch_shapes=[
            pltpu.VMEM((N, H + 2, (W + 2) * Cin), jnp.float32),          # padded x slab
            pltpu.VMEM((N, H + 2, (W + 2) * Cout), jnp.float32),         # padded h1 slab
        ],
        cost_estimate=pl.CostEstimate(flops=flops,
                                      transcendentals=2 * NHW * Cout,
                                      bytes_accessed=bytes_accessed),
    )(*inputs)

    out = out.reshape(N, H, W, Cout)                                     # wrapper-side relayout
    return jnp.transpose(out, (0, 3, 1, 2))                              # NHWC -> NCHW


def init_params(key, in_channels, out_channels):
    ks = jax.random.split(key, 6)
    p = {
        "w1": 0.1 * jax.random.normal(ks[0], (3, 3, in_channels, out_channels), jnp.float32),
        "b1": 0.1 * jax.random.normal(ks[1], (1, out_channels), jnp.float32),
        "g1": jnp.ones((1, out_channels), jnp.float32),
        "be1": jnp.zeros((1, out_channels), jnp.float32),
        "w2": 0.1 * jax.random.normal(ks[2], (3, 3, out_channels, out_channels), jnp.float32),
        "b2": 0.1 * jax.random.normal(ks[3], (1, out_channels), jnp.float32),
        "g2": jnp.ones((1, out_channels), jnp.float32),
        "be2": jnp.zeros((1, out_channels), jnp.float32),
    }
    if in_channels != out_channels:
        p["wsc"] = 0.1 * jax.random.normal(ks[4], (in_channels, out_channels), jnp.float32)
        p["bsc"] = 0.1 * jax.random.normal(ks[5], (1, out_channels), jnp.float32)
    return p


def reference_forward(params, x_nchw, use_res=True):
    """Pure-JAX reference (mirrors PyTorch training-mode forward, conv biases included)."""
    x = jnp.transpose(x_nchw, (0, 2, 3, 1)).astype(jnp.float32)

    def conv3(h, w, b):
        return lax.conv_general_dilated(
            h, w, (1, 1), "SAME", dimension_numbers=("NHWC", "HWIO", "NHWC")) + b.reshape(-1)

    def bn(h, g, be):
        m = jnp.mean(h, axis=(0, 1, 2), keepdims=True)
        v = jnp.mean((h - m) ** 2, axis=(0, 1, 2), keepdims=True)
        return (h - m) * lax.rsqrt(v + EPS) * g.reshape(-1) + be.reshape(-1)

    def gelu(h):
        return 0.5 * h * (1.0 + lax.erf(h / jnp.sqrt(jnp.float32(2.0))))

    h1 = gelu(bn(conv3(x, params["w1"], params["b1"]), params["g1"], params["be1"]))
    h2 = gelu(bn(conv3(h1, params["w2"], params["b2"]), params["g2"], params["be2"]))
    if use_res:
        if "wsc" in params:
            sc = jnp.einsum("nhwc,co->nhwo", x, params["wsc"]) + params["bsc"].reshape(-1)
            h2 = h2 + sc
        else:
            h2 = h2 + x
    return jnp.transpose(h2, (0, 3, 1, 2))


if __name__ == "__main__":
    key = jax.random.PRNGKey(0)
    k_x, k_p, k_p2 = jax.random.split(key, 3)

    N, Cin, Cout, HW = 2, 4, 8, 16
    x = jax.random.normal(k_x, (N, Cin, HW, HW), jnp.float32)            # NCHW, as in PyTorch

    # Case 1: in_channels != out_channels -> 1x1-conv shortcut fused into the kernel.
    params = init_params(k_p, Cin, Cout)
    out = jax.block_until_ready(residual_block_forward(params, x, use_res=True))
    ref = jax.block_until_ready(reference_forward(params, x, use_res=True))
    assert out.shape == (N, Cout, HW, HW), out.shape
    assert jnp.allclose(out, ref, rtol=1e-4, atol=1e-4), \
        f"max abs err = {jnp.max(jnp.abs(out - ref))}"

    # Case 2: in_channels == out_channels -> identity residual fused into the kernel.
    params2 = init_params(k_p2, Cout, Cout)
    x2 = jax.random.normal(k_x, (N, Cout, HW, HW), jnp.float32)
    out2 = jax.block_until_ready(residual_block_forward(params2, x2, use_res=True))
    ref2 = jax.block_until_ready(reference_forward(params2, x2, use_res=True))
    assert jnp.allclose(out2, ref2, rtol=1e-4, atol=1e-4), \
        f"max abs err = {jnp.max(jnp.abs(out2 - ref2))}"

    print("KERNEL_OK")
</pallas_src>

<mosaic_0001>
module attributes {stable_mosaic.version = 11 : i64} {
  func.func @kernel(%arg0: memref<2x16x64xf32, #tpu.memory_space<vmem>>, %arg1: memref<3x72x128xf32, #tpu.memory_space<vmem>>, %arg2: memref<1x8xf32, #tpu.memory_space<vmem>>, %arg3: memref<1x8xf32, #tpu.memory_space<vmem>>, %arg4: memref<3x144x128xf32, #tpu.memory_space<vmem>>, %arg5: memref<1x8xf32, #tpu.memory_space<vmem>>, %arg6: memref<1x8xf32, #tpu.memory_space<vmem>>, %arg7: memref<128x8xf32, #tpu.memory_space<vmem>>, %arg8: memref<8x128xf32, #tpu.memory_space<vmem>>, %arg9: memref<64x128xf32, #tpu.memory_space<vmem>>, %arg10: memref<1x128xf32, #tpu.memory_space<vmem>>, %arg11: memref<32x128xf32, #tpu.memory_space<vmem>>, %arg12: memref<2x18x72xf32, #tpu.memory_space<vmem>>, %arg13: memref<2x18x144xf32, #tpu.memory_space<vmem>>) attributes {dimension_semantics = [], scalar_prefetch = 0 : i64, scratch_operands = 2 : i64, tpu.core_type = #tpu.core_type<tc>} {
    %cst = arith.constant 0.000000e+00 : f32
    %0 = vector.broadcast %cst : f32 to vector<2x1x72xf32>
    %c0 = arith.constant 0 : index
    %c0_0 = arith.constant 0 : index
    %c0_1 = arith.constant 0 : index
    %1 = vector.load %arg12[%c0, %c0_0, %c0_1] : memref<2x18x72xf32, #tpu.memory_space<vmem>>, vector<2x1x72xf32>
    tpu.vector_store %arg12[%c0, %c0_0, %c0_1], %0 {strides = array<i32>} : memref<2x18x72xf32, #tpu.memory_space<vmem>>, vector<2x1x72xf32>,
    %cst_2 = arith.constant 0.000000e+00 : f32
    %2 = vector.broadcast %cst_2 : f32 to vector<2x1x72xf32>
    %c0_3 = arith.constant 0 : index
    %c17 = arith.constant 17 : index
    %c0_4 = arith.constant 0 : index
    %3 = vector.load %arg12[%c0_3, %c17, %c0_4] : memref<2x18x72xf32, #tpu.memory_space<vmem>>, vector<2x1x72xf32>
    tpu.vector_store %arg12[%c0_3, %c17, %c0_4], %2 {strides = array<i32>} : memref<2x18x72xf32, #tpu.memory_space<vmem>>, vector<2x1x72xf32>,
    %cst_5 = arith.constant 0.000000e+00 : f32
    %4 = vector.broadcast %cst_5 : f32 to vector<2x18x4xf32>
    %c0_6 = arith.constant 0 : index
    %c0_7 = arith.constant 0 : index
    %c0_8 = arith.constant 0 : index
    %5 = vector.load %arg12[%c0_6, %c0_7, %c0_8] : memref<2x18x72xf32, #tpu.memory_space<vmem>>, vector<2x18x4xf32>
    tpu.vector_store %arg12[%c0_6, %c0_7, %c0_8], %4 {strides = array<i32>} : memref<2x18x72xf32, #tpu.memory_space<vmem>>, vector<2x18x4xf32>,
    %cst_9 = arith.constant 0.000000e+00 : f32
    %6 = vector.broadcast %cst_9 : f32 to vector<2x18x4xf32>
    %c0_10 = arith.constant 0 : index
    %c0_11 = arith.constant 0 : index
    %c68 = arith.constant 68 : index
    %7 = vector.load %arg12[%c0_10, %c0_11, %c68] : memref<2x18x72xf32, #tpu.memory_space<vmem>>, vector<2x18x4xf32>
    tpu.vector_store %arg12[%c0_10, %c0_11, %c68], %6 {strides = array<i32>} : memref<2x18x72xf32, #tpu.memory_space<vmem>>, vector<2x18x4xf32>,
    %c0_12 = arith.constant 0 : index
    %c0_13 = arith.constant 0 : index
    %c0_14 = arith.constant 0 : index
    %8 = vector.load %arg0[%c0_12, %c0_13, %c0_14] : memref<2x16x64xf32, #tpu.memory_space<vmem>>, vector<2x16x64xf32>
    %c0_15 = arith.constant 0 : index
    %c1 = arith.constant 1 : index
    %c4 = arith.constant 4 : index
    %9 = vector.load %arg12[%c0_15, %c1, %c4] : memref<2x18x72xf32, #tpu.memory_space<vmem>>, vector<2x16x64xf32>
    tpu.vector_store %arg12[%c0_15, %c1, %c4], %8 {strides = array<i32>} : memref<2x18x72xf32, #tpu.memory_space<vmem>>, vector<2x16x64xf32>,
    %c0_16 = arith.constant 0 : index
    %c0_17 = arith.constant 0 : index
    %c0_18 = arith.constant 0 : index
    %10 = vector.load %arg12[%c0_16, %c0_17, %c0_18] : memref<2x18x72xf32, #tpu.memory_space<vmem>>, vector<2x16x72xf32>
    %11 = vector.shape_cast %10 : vector<2x16x72xf32> to vector<32x72xf32>
    %c0_19 = arith.constant 0 : index
    %c0_20 = arith.constant 0 : index
    %c0_21 = arith.constant 0 : index
    %12 = vector.load %arg1[%c0_19, %c0_20, %c0_21] : memref<3x72x128xf32, #tpu.memory_space<vmem>>, vector<1x72x128xf32>
    %13 = vector.shape_cast %12 : vector<1x72x128xf32> to vector<72x128xf32>
    %cst_22 = arith.constant dense<0.000000e+00> : vector<32x128xf32>
    %14 = tpu.matmul %11, %13, %cst_22 {dimension_numbers = #tpu.dot_dimension_numbers<[1], [0], [0], [1], [0, 0, 1, 1], [], []>} : vector<32x72xf32>, vector<72x128xf32>, vector<32x128xf32> -> vector<32x128xf32>
    %c0_23 = arith.constant 0 : index
    %c1_24 = arith.constant 1 : index
    %c0_25 = arith.constant 0 : index
    %15 = vector.load %arg12[%c0_23, %c1_24, %c0_25] : memref<2x18x72xf32, #tpu.memory_space<vmem>>, vector<2x16x72xf32>
    %16 = vector.shape_cast %15 : vector<2x16x72xf32> to vector<32x72xf32>
    %c1_26 = arith.constant 1 : index
    %c0_27 = arith.constant 0 : index
    %c0_28 = arith.constant 0 : index
    %17 = vector.load %arg1[%c1_26, %c0_27, %c0_28] : memref<3x72x128xf32, #tpu.memory_space<vmem>>, vector<1x72x128xf32>
    %18 = vector.shape_cast %17 : vector<1x72x128xf32> to vector<72x128xf32>
    %cst_29 = arith.constant dense<0.000000e+00> : vector<32x128xf32>
    %19 = tpu.matmul %16, %18, %cst_29 {dimension_numbers = #tpu.dot_dimension_numbers<[1], [0], [0], [1], [0, 0, 1, 1], [], []>} : vector<32x72xf32>, vector<72x128xf32>, vector<32x128xf32> -> vector<32x128xf32>
    %20 = arith.addf %14, %19 : vector<32x128xf32>
    %c0_30 = arith.constant 0 : index
    %c2 = arith.constant 2 : index
    %c0_31 = arith.constant 0 : index
    %21 = vector.load %arg12[%c0_30, %c2, %c0_31] : memref<2x18x72xf32, #tpu.memory_space<vmem>>, vector<2x16x72xf32>
    %22 = vector.shape_cast %21 : vector<2x16x72xf32> to vector<32x72xf32>
    %c2_32 = arith.constant 2 : index
    %c0_33 = arith.constant 0 : index
    %c0_34 = arith.constant 0 : index
    %23 = vector.load %arg1[%c2_32, %c0_33, %c0_34] : memref<3x72x128xf32, #tpu.memory_space<vmem>>, vector<1x72x128xf32>
    %24 = vector.shape_cast %23 : vector<1x72x128xf32> to vector<72x128xf32>
    %cst_35 = arith.constant dense<0.000000e+00> : vector<32x128xf32>
    %25 = tpu.matmul %22, %24, %cst_35 {dimension_numbers = #tpu.dot_dimension_numbers<[1], [0], [0], [1], [0, 0, 1, 1], [], []>} : vector<32x72xf32>, vector<72x128xf32>, vector<32x128xf32> -> vector<32x128xf32>
    %26 = arith.addf %20, %25 : vector<32x128xf32>
    %cst_36 = arith.constant dense<0.000000e+00> : vector<128xf32>
    %27 = vector.multi_reduction <add>, %26, %cst_36 [0] : vector<32x128xf32> to vector<128xf32>
    %28 = vector.shape_cast %27 : vector<128xf32> to vector<1x128xf32>
    %29 = arith.mulf %26, %26 : vector<32x128xf32>
    %cst_37 = arith.constant dense<0.000000e+00> : vector<128xf32>
    %30 = vector.multi_reduction <add>, %29, %cst_37 [0] : vector<32x128xf32> to vector<128xf32>
    %31 = vector.shape_cast %30 : vector<128xf32> to vector<1x128xf32>
    %c0_38 = arith.constant 0 : index
    %c0_39 = arith.constant 0 : index
    %32 = vector.load %arg7[%c0_38, %c0_39] : memref<128x8xf32, #tpu.memory_space<vmem>>, vector<128x8xf32>
    %cst_40 = arith.constant dense<0.000000e+00> : vector<1x8xf32>
    %33 = tpu.matmul %28, %32, %cst_40 {dimension_numbers = #tpu.dot_dimension_numbers<[1], [0], [0], [1], [0, 0, 1, 1], [], []>} : vector<1x128xf32>, vector<128x8xf32>, vector<1x8xf32> -> vector<1x8xf32>
    %c0_41 = arith.constant 0 : index
    %c0_42 = arith.constant 0 : index
    %34 = vector.load %arg7[%c0_41, %c0_42] : memref<128x8xf32, #tpu.memory_space<vmem>>, vector<128x8xf32>
    %cst_43 = arith.constant dense<0.000000e+00> : vector<1x8xf32>
    %35 = tpu.matmul %31, %34, %cst_43 {dimension_numbers = #tpu.dot_dimension_numbers<[1], [0], [0], [1], [0, 0, 1, 1], [], []>} : vector<1x128xf32>, vector<128x8xf32>, vector<1x8xf32> -> vector<1x8xf32>
    %cst_44 = arith.constant 0.001953125 : f32
    %36 = vector.broadcast %cst_44 : f32 to vector<1x8xf32>
    %37 = arith.mulf %33, %36 : vector<1x8xf32>
    %cst_45 = arith.constant 0.001953125 : f32
    %38 = vector.broadcast %cst_45 : f32 to vector<1x8xf32>
    %39 = arith.mulf %35, %38 : vector<1x8xf32>
    %40 = arith.mulf %37, %37 : vector<1x8xf32>
    %41 = arith.subf %39, %40 : vector<1x8xf32>
    %c0_46 = arith.constant 0 : index
    %c0_47 = arith.constant 0 : index
    %42 = vector.load %arg2[%c0_46, %c0_47] : memref<1x8xf32, #tpu.memory_space<vmem>>, vector<1x8xf32>
    %cst_48 = arith.constant 9.99999974E-6 : f32
    %43 = vector.broadcast %cst_48 : f32 to vector<1x8xf32>
    %44 = arith.addf %41, %43 : vector<1x8xf32>
    %45 = math.rsqrt %44 : vector<1x8xf32>
    %46 = arith.mulf %42, %45 : vector<1x8xf32>
    %c0_49 = arith.constant 0 : index
    %c0_50 = arith.constant 0 : index
    %47 = vector.load %arg3[%c0_49, %c0_50] : memref<1x8xf32, #tpu.memory_space<vmem>>, vector<1x8xf32>
    %48 = arith.mulf %37, %46 : vector<1x8xf32>
    %49 = arith.subf %47, %48 : vector<1x8xf32>
    %c0_51 = arith.constant 0 : index
    %c0_52 = arith.constant 0 : index
    %50 = vector.load %arg8[%c0_51, %c0_52] : memref<8x128xf32, #tpu.memory_space<vmem>>, vector<8x128xf32>
    %cst_53 = arith.constant dense<0.000000e+00> : vector<1x128xf32>
    %51 = tpu.matmul %46, %50, %cst_53 {dimension_numbers = #tpu.dot_dimension_numbers<[1], [0], [0], [1], [0, 0, 1, 1], [], []>} : vector<1x8xf32>, vector<8x128xf32>, vector<1x128xf32> -> vector<1x128xf32>
    %c0_54 = arith.constant 0 : index
    %c0_55 = arith.constant 0 : index
    %52 = vector.load %arg8[%c0_54, %c0_55] : memref<8x128xf32, #tpu.memory_space<vmem>>, vector<8x128xf32>
    %cst_56 = arith.constant dense<0.000000e+00> : vector<1x128xf32>
    %53 = tpu.matmul %49, %52, %cst_56 {dimension_numbers = #tpu.dot_dimension_numbers<[1], [0], [0], [1], [0, 0, 1, 1], [], []>} : vector<1x8xf32>, vector<8x128xf32>, vector<1x128xf32> -> vector<1x128xf32>
    %54 = vector.broadcast %51 : vector<1x128xf32> to vector<32x128xf32>
    %55 = arith.mulf %26, %54 : vector<32x128xf32>
    %56 = vector.broadcast %53 : vector<1x128xf32> to vector<32x128xf32>
    %57 = arith.addf %55, %56 : vector<32x128xf32>
    %cst_57 = arith.constant 5.000000e-01 : f32
    %58 = vector.broadcast %cst_57 : f32 to vector<32x128xf32>
    %59 = arith.mulf %58, %57 : vector<32x128xf32>
    %cst_58 = arith.constant 2.000000e+00 : f32
    %60 = math.sqrt %cst_58 : f32
    %61 = vector.broadcast %60 : f32 to vector<32x128xf32>
    %62 = arith.divf %57, %61 : vector<32x128xf32>
    %63 = math.erf %62 : vector<32x128xf32>
    %cst_59 = arith.constant 1.000000e+00 : f32
    %64 = vector.broadcast %cst_59 : f32 to vector<32x128xf32>
    %65 = arith.addf %64, %63 : vector<32x128xf32>
    %66 = arith.mulf %59, %65 : vector<32x128xf32>
    %cst_60 = arith.constant 0.000000e+00 : f32
    %67 = vector.broadcast %cst_60 : f32 to vector<2x1x144xf32>
    %c0_61 = arith.constant 0 : index
    %c0_62 = arith.constant 0 : index
    %c0_63 = arith.constant 0 : index
    %68 = vector.load %arg13[%c0_61, %c0_62, %c0_63] : memref<2x18x144xf32, #tpu.memory_space<vmem>>, vector<2x1x144xf32>
    tpu.vector_store %arg13[%c0_61, %c0_62, %c0_63], %67 {strides = array<i32>} : memref<2x18x144xf32, #tpu.memory_space<vmem>>, vector<2x1x144xf32>,
    %cst_64 = arith.constant 0.000000e+00 : f32
    %69 = vector.broadcast %cst_64 : f32 to vector<2x1x144xf32>
    %c0_65 = arith.constant 0 : index
    %c17_66 = arith.constant 17 : index
    %c0_67 = arith.constant 0 : index
    %70 = vector.load %arg13[%c0_65, %c17_66, %c0_67] : memref<2x18x144xf32, #tpu.memory_space<vmem>>, vector<2x1x144xf32>
    tpu.vector_store %arg13[%c0_65, %c17_66, %c0_67], %69 {strides = array<i32>} : memref<2x18x144xf32, #tpu.memory_space<vmem>>, vector<2x1x144xf32>,
    %cst_68 = arith.constant 0.000000e+00 : f32
    %71 = vector.broadcast %cst_68 : f32 to vector<2x18x8xf32>
    %c0_69 = arith.constant 0 : index
    %c0_70 = arith.constant 0 : index
    %c0_71 = arith.constant 0 : index
    %72 = vector.load %arg13[%c0_69, %c0_70, %c0_71] : memref<2x18x144xf32, #tpu.memory_space<vmem>>, vector<2x18x8xf32>
    tpu.vector_store %arg13[%c0_69, %c0_70, %c0_71], %71 {strides = array<i32>} : memref<2x18x144xf32, #tpu.memory_space<vmem>>, vector<2x18x8xf32>,
    %cst_72 = arith.constant 0.000000e+00 : f32
    %73 = vector.broadcast %cst_72 : f32 to vector<2x18x8xf32>
    %c0_73 = arith.constant 0 : index
    %c0_74 = arith.constant 0 : index
    %c136 = arith.constant 136 : index
    %74 = vector.load %arg13[%c0_73, %c0_74, %c136] : memref<2x18x144xf32, #tpu.memory_space<vmem>>, vector<2x18x8xf32>
    tpu.vector_store %arg13[%c0_73, %c0_74, %c136], %73 {strides = array<i32>} : memref<2x18x144xf32, #tpu.memory_space<vmem>>, vector<2x18x8xf32>,
    %75 = vector.shape_cast %66 : vector<32x128xf32> to vector<2x16x128xf32>
    %c0_75 = arith.constant 0 : index
    %c1_76 = arith.constant 1 : index
    %c8 = arith.constant 8 : index
    %76 = vector.load %arg13[%c0_75, %c1_76, %c8] : memref<2x18x144xf32, #tpu.memory_space<vmem>>, vector<2x16x128xf32>
    tpu.vector_store %arg13[%c0_75, %c1_76, %c8], %75 {strides = array<i32>} : memref<2x18x144xf32, #tpu.memory_space<vmem>>, vector<2x16x128xf32>,
    %c0_77 = arith.constant 0 : index
    %c0_78 = arith.constant 0 : index
    %c0_79 = arith.constant 0 : index
    %77 = vector.load %arg13[%c0_77, %c0_78, %c0_79] : memref<2x18x144xf32, #tpu.memory_space<vmem>>, vector<2x16x144xf32>
    %78 = vector.shape_cast %77 : vector<2x16x144xf32> to vector<32x144xf32>
    %c0_80 = arith.constant 0 : index
    %c0_81 = arith.constant 0 : index
    %c0_82 = arith.constant 0 : index
    %79 = vector.load %arg4[%c0_80, %c0_81, %c0_82] : memref<3x144x128xf32, #tpu.memory_space<vmem>>, vector<1x144x128xf32>
    %80 = vector.shape_cast %79 : vector<1x144x128xf32> to vector<144x128xf32>
    %cst_83 = arith.constant dense<0.000000e+00> : vector<32x128xf32>
    %81 = tpu.matmul %78, %80, %cst_83 {dimension_numbers = #tpu.dot_dimension_numbers<[1], [0], [0], [1], [0, 0, 1, 1], [], []>} : vector<32x144xf32>, vector<144x128xf32>, vector<32x128xf32> -> vector<32x128xf32>
    %c0_84 = arith.constant 0 : index
    %c1_85 = arith.constant 1 : index
    %c0_86 = arith.constant 0 : index
    %82 = vector.load %arg13[%c0_84, %c1_85, %c0_86] : memref<2x18x144xf32, #tpu.memory_space<vmem>>, vector<2x16x144xf32>
    %83 = vector.shape_cast %82 : vector<2x16x144xf32> to vector<32x144xf32>
    %c1_87 = arith.constant 1 : index
    %c0_88 = arith.constant 0 : index
    %c0_89 = arith.constant 0 : index
    %84 = vector.load %arg4[%c1_87, %c0_88, %c0_89] : memref<3x144x128xf32, #tpu.memory_space<vmem>>, vector<1x144x128xf32>
    %85 = vector.shape_cast %84 : vector<1x144x128xf32> to vector<144x128xf32>
    %cst_90 = arith.constant dense<0.000000e+00> : vector<32x128xf32>
    %86 = tpu.matmul %83, %85, %cst_90 {dimension_numbers = #tpu.dot_dimension_numbers<[1], [0], [0], [1], [0, 0, 1, 1], [], []>} : vector<32x144xf32>, vector<144x128xf32>, vector<32x128xf32> -> vector<32x128xf32>
    %87 = arith.addf %81, %86 : vector<32x128xf32>
    %c0_91 = arith.constant 0 : index
    %c2_92 = arith.constant 2 : index
    %c0_93 = arith.constant 0 : index
    %88 = vector.load %arg13[%c0_91, %c2_92, %c0_93] : memref<2x18x144xf32, #tpu.memory_space<vmem>>, vector<2x16x144xf32>
    %89 = vector.shape_cast %88 : vector<2x16x144xf32> to vector<32x144xf32>
    %c2_94 = arith.constant 2 : index
    %c0_95 = arith.constant 0 : index
    %c0_96 = arith.constant 0 : index
    %90 = vector.load %arg4[%c2_94, %c0_95, %c0_96] : memref<3x144x128xf32, #tpu.memory_space<vmem>>, vector<1x144x128xf32>
    %91 = vector.shape_cast %90 : vector<1x144x128xf32> to vector<144x128xf32>
    %cst_97 = arith.constant dense<0.000000e+00> : vector<32x128xf32>
    %92 = tpu.matmul %89, %91, %cst_97 {dimension_numbers = #tpu.dot_dimension_numbers<[1], [0], [0], [1], [0, 0, 1, 1], [], []>} : vector<32x144xf32>, vector<144x128xf32>, vector<32x128xf32> -> vector<32x128xf32>
    %93 = arith.addf %87, %92 : vector<32x128xf32>
    %cst_98 = arith.constant dense<0.000000e+00> : vector<128xf32>
    %94 = vector.multi_reduction <add>, %93, %cst_98 [0] : vector<32x128xf32> to vector<128xf32>
    %95 = vector.shape_cast %94 : vector<128xf32> to vector<1x128xf32>
    %96 = arith.mulf %93, %93 : vector<32x128xf32>
    %cst_99 = arith.constant dense<0.000000e+00> : vector<128xf32>
    %97 = vector.multi_reduction <add>, %96, %cst_99 [0] : vector<32x128xf32> to vector<128xf32>
    %98 = vector.shape_cast %97 : vector<128xf32> to vector<1x128xf32>
    %c0_100 = arith.constant 0 : index
    %c0_101 = arith.constant 0 : index
    %99 = vector.load %arg7[%c0_100, %c0_101] : memref<128x8xf32, #tpu.memory_space<vmem>>, vector<128x8xf32>
    %cst_102 = arith.constant dense<0.000000e+00> : vector<1x8xf32>
    %100 = tpu.matmul %95, %99, %cst_102 {dimension_numbers = #tpu.dot_dimension_numbers<[1], [0], [0], [1], [0, 0, 1, 1], [], []>} : vector<1x128xf32>, vector<128x8xf32>, vector<1x8xf32> -> vector<1x8xf32>
    %c0_103 = arith.constant 0 : index
    %c0_104 = arith.constant 0 : index
    %101 = vector.load %arg7[%c0_103, %c0_104] : memref<128x8xf32, #tpu.memory_space<vmem>>, vector<128x8xf32>
    %cst_105 = arith.constant dense<0.000000e+00> : vector<1x8xf32>
    %102 = tpu.matmul %98, %101, %cst_105 {dimension_numbers = #tpu.dot_dimension_numbers<[1], [0], [0], [1], [0, 0, 1, 1], [], []>} : vector<1x128xf32>, vector<128x8xf32>, vector<1x8xf32> -> vector<1x8xf32>
    %cst_106 = arith.constant 0.001953125 : f32
    %103 = vector.broadcast %cst_106 : f32 to vector<1x8xf32>
    %104 = arith.mulf %100, %103 : vector<1x8xf32>
    %cst_107 = arith.constant 0.001953125 : f32
    %105 = vector.broadcast %cst_107 : f32 to vector<1x8xf32>
    %106 = arith.mulf %102, %105 : vector<1x8xf32>
    %107 = arith.mulf %104, %104 : vector<1x8xf32>
    %108 = arith.subf %106, %107 : vector<1x8xf32>
    %c0_108 = arith.constant 0 : index
    %c0_109 = arith.constant 0 : index
    %109 = vector.load %arg5[%c0_108, %c0_109] : memref<1x8xf32, #tpu.memory_space<vmem>>, vector<1x8xf32>
    %cst_110 = arith.constant 9.99999974E-6 : f32
    %110 = vector.broadcast %cst_110 : f32 to vector<1x8xf32>
    %111 = arith.addf %108, %110 : vector<1x8xf32>
    %112 = math.rsqrt %111 : vector<1x8xf32>
    %113 = arith.mulf %109, %112 : vector<1x8xf32>
    %c0_111 = arith.constant 0 : index
    %c0_112 = arith.constant 0 : index
    %114 = vector.load %arg6[%c0_111, %c0_112] : memref<1x8xf32, #tpu.memory_space<vmem>>, vector<1x8xf32>
    %115 = arith.mulf %104, %113 : vector<1x8xf32>
    %116 = arith.subf %114, %115 : vector<1x8xf32>
    %c0_113 = arith.constant 0 : index
    %c0_114 = arith.constant 0 : index
    %117 = vector.load %arg8[%c0_113, %c0_114] : memref<8x128xf32, #tpu.memory_space<vmem>>, vector<8x128xf32>
    %cst_115 = arith.constant dense<0.000000e+00> : vector<1x128xf32>
    %118 = tpu.matmul %113, %117, %cst_115 {dimension_numbers = #tpu.dot_dimension_numbers<[1], [0], [0], [1], [0, 0, 1, 1], [], []>} : vector<1x8xf32>, vector<8x128xf32>, vector<1x128xf32> -> vector<1x128xf32>
    %c0_116 = arith.constant 0 : index
    %c0_117 = arith.constant 0 : index
    %119 = vector.load %arg8[%c0_116, %c0_117] : memref<8x128xf32, #tpu.memory_space<vmem>>, vector<8x128xf32>
    %cst_118 = arith.constant dense<0.000000e+00> : vector<1x128xf32>
    %120 = tpu.matmul %116, %119, %cst_118 {dimension_numbers = #tpu.dot_dimension_numbers<[1], [0], [0], [1], [0, 0, 1, 1], [], []>} : vector<1x8xf32>, vector<8x128xf32>, vector<1x128xf32> -> vector<1x128xf32>
    %121 = vector.broadcast %118 : vector<1x128xf32> to vector<32x128xf32>
    %122 = arith.mulf %93, %121 : vector<32x128xf32>
    %123 = vector.broadcast %120 : vector<1x128xf32> to vector<32x128xf32>
    %124 = arith.addf %122, %123 : vector<32x128xf32>
    %cst_119 = arith.constant 5.000000e-01 : f32
    %125 = vector.broadcast %cst_119 : f32 to vector<32x128xf32>
    %126 = arith.mulf %125, %124 : vector<32x128xf32>
    %cst_120 = arith.constant 2.000000e+00 : f32
    %127 = math.sqrt %cst_120 : f32
    %128 = vector.broadcast %127 : f32 to vector<32x128xf32>
    %129 = arith.divf %124, %128 : vector<32x128xf32>
    %130 = math.erf %129 : vector<32x128xf32>
    %cst_121 = arith.constant 1.000000e+00 : f32
    %131 = vector.broadcast %cst_121 : f32 to vector<32x128xf32>
    %132 = arith.addf %131, %130 : vector<32x128xf32>
    %133 = arith.mulf %126, %132 : vector<32x128xf32>
    %c0_122 = arith.constant 0 : index
    %c0_123 = arith.constant 0 : index
    %c0_124 = arith.constant 0 : index
    %134 = vector.load %arg0[%c0_122, %c0_123, %c0_124] : memref<2x16x64xf32, #tpu.memory_space<vmem>>, vector<2x16x64xf32>
    %135 = vector.shape_cast %134 : vector<2x16x64xf32> to vector<32x64xf32>
    %c0_125 = arith.constant 0 : index
    %c0_126 = arith.constant 0 : index
    %136 = vector.load %arg9[%c0_125, %c0_126] : memref<64x128xf32, #tpu.memory_space<vmem>>, vector<64x128xf32>
    %cst_127 = arith.constant dense<0.000000e+00> : vector<32x128xf32>
    %137 = tpu.matmul %135, %136, %cst_127 {dimension_numbers = #tpu.dot_dimension_numbers<[1], [0], [0], [1], [0, 0, 1, 1], [], []>} : vector<32x64xf32>, vector<64x128xf32>, vector<32x128xf32> -> vector<32x128xf32>
    %c0_128 = arith.constant 0 : index
    %c0_129 = arith.constant 0 : index
    %138 = vector.load %arg10[%c0_128, %c0_129] : memref<1x128xf32, #tpu.memory_space<vmem>>, vector<1x128xf32>
    %139 = vector.broadcast %138 : vector<1x128xf32> to vector<32x128xf32>
    %140 = arith.addf %137, %139 : vector<32x128xf32>
    %141 = arith.addf %133, %140 : vector<32x128xf32>
    %c0_130 = arith.constant 0 : index
    %c0_131 = arith.constant 0 : index
    %142 = vector.load %arg11[%c0_130, %c0_131] : memref<32x128xf32, #tpu.memory_space<vmem>>, vector<32x128xf32>
    tpu.vector_store %arg11[%c0_130, %c0_131], %141 {strides = array<i32>} : memref<32x128xf32, #tpu.memory_space<vmem>>, vector<32x128xf32>,
    return
  }
}

</mosaic_0001>

<llo_original>
// kernel: tpu_custom_call.1
$region0: #{tpu_custom_call.1}
  #allocation0 [shape = 'u32[]', space=smem, size = 0x4, offset = 0x4, fixed_abs, tag = 'smem constant byte address 0x4 - core index']
  #allocation1 [shape = 'u32[72,128]{1,0:T(1,128)}', space=vmem, size = 0x9000, scoped, tag = 'internal scratch']
  #allocation2 [shape = 'f32[2,18,72]{2,1,0:T(8,128)}', space=vmem, size = 0x6000, scoped, tag = 'scratch operand']
  #allocation3 [shape = 'f32[2,18,144]{2,1,0:T(8,128)}', space=vmem, size = 0xc000, scoped, tag = 'scratch operand']
  %s0 = inlined_call_operand.vmem [shape: f32[2,16,64], index: 0, kind: input, shape index: {}]
  %s1 = inlined_call_operand.hbm [shape: f32[3,72,128], index: 1, kind: input, shape index: {}]
  %s2 = inlined_call_operand.vmem [shape: f32[1,8], index: 2, kind: input, shape index: {}]
  %s3 = inlined_call_operand.vmem [shape: f32[1,8], index: 3, kind: input, shape index: {}]
  %s4 = inlined_call_operand.hbm [shape: f32[3,144,128], index: 4, kind: input, shape index: {}]
  %s5 = inlined_call_operand.vmem [shape: f32[1,8], index: 5, kind: input, shape index: {}]
  %s6 = inlined_call_operand.vmem [shape: f32[1,8], index: 6, kind: input, shape index: {}]
  %s7 = inlined_call_operand.vmem [shape: f32[128,8], index: 7, kind: input, shape index: {}]
  %s8 = inlined_call_operand.vmem [shape: f32[8,128], index: 8, kind: input, shape index: {}]
  %s9 = inlined_call_operand.vmem [shape: f32[64,128], index: 9, kind: input, shape index: {}]
  %s10 = inlined_call_operand.vmem [shape: f32[1,128], index: 10, kind: input, shape index: {}]
  %s11 = inlined_call_operand.hbm [shape: f32[32,128], index: 11, kind: output, shape index: {}]
  %s12 = sld [smem:[#allocation0]]
  $region62: #{tpu_custom_call.1} parent=0
    _
  %s14 = ssub.s32 1, %s12
  %s15 = scalar_select 0, %s14, %s12
  $region1: #{tpu_custom_call.1} parent=0
    #allocation4 [shape = 'u8[110592]{0}', space=vmem, size = 0x1b000, scoped, tag = 'input window, operand 1, single buffered']
    #allocation5 [shape = 's32[1]{0}', space=sflag, size = 0x4, scoped, tag = 'scoped memory for tpu_custom_call.1']
    #allocation6 [shape = 's32[1]{0}', space=sflag, size = 0x4, scoped, tag = 'scoped memory for tpu_custom_call.1']
    #allocation7 [shape = 'u8[221184]{0}', space=vmem, size = 0x36000, scoped, tag = 'input window, operand 4, single buffered']
    #allocation8 [shape = 's32[1]{0}', space=sflag, size = 0x4, scoped, tag = 'scoped memory for tpu_custom_call.1']
    #allocation9 [shape = 'u8[16384]{0}', space=vmem, size = 0x4000, scoped, tag = 'output window, operand 0, single buffered']
    %16 = vsyncpa [#allocation5], 0
    %17 = vsyncpa [#allocation8], 0
    %18 = vsyncpa [#allocation6], 0
    // Predicated region
    $region2: #{tpu_custom_call.1} parent=1 // pred_check
      _
    $region3: #{tpu_custom_call.1} parent=1 // pred_check_branch
      %20 = sbr.rel (0) target = $region5
    $region4: #{tpu_custom_call.1} parent=1 // pred_region
      _
    $region5: #{tpu_custom_call.1} parent=1 // pred_fallthru
      _
    // Predicated region
    $region6: #{tpu_custom_call.1} parent=1 // pred_check
      _
    $region7: #{tpu_custom_call.1} parent=1 // pred_check_branch
      %22 = sbr.rel (0) target = $region9
    $region8: #{tpu_custom_call.1} parent=1 // pred_region
      %24 = vsyncadd [#allocation5], 0
      %s25 = sshll.u32 %s1, 4
      %s26 = int_to_ptr.hbm [resolvable:$true] %s25
      %s27 = sshll.u32 [#allocation4], 4
      %s28 = int_to_ptr.vmem [resolvable:$true] %s27
      %33 = dma.hbm_to_vmem [thread:$0]  %s26, 3456, %s28, [#allocation5], 128, 128, 8
    $region9: #{tpu_custom_call.1} parent=1 // pred_fallthru
      _
    // Predicated region
    $region10: #{tpu_custom_call.1} parent=1 // pred_check
      _
    $region11: #{tpu_custom_call.1} parent=1 // pred_check_branch
      %35 = sbr.rel (0) target = $region13
    $region12: #{tpu_custom_call.1} parent=1 // pred_region
      _
    $region13: #{tpu_custom_call.1} parent=1 // pred_fallthru
      _
    // Predicated region
    $region14: #{tpu_custom_call.1} parent=1 // pred_check
      _
    $region15: #{tpu_custom_call.1} parent=1 // pred_check_branch
      %37 = sbr.rel (0) target = $region17
    $region16: #{tpu_custom_call.1} parent=1 // pred_region
      _
    $region17: #{tpu_custom_call.1} parent=1 // pred_fallthru
      _
    // Predicated region
    $region18: #{tpu_custom_call.1} parent=1 // pred_check
      _
    $region19: #{tpu_custom_call.1} parent=1 // pred_check_branch
      %39 = sbr.rel (0) target = $region21
    $region20: #{tpu_custom_call.1} parent=1 // pred_region
      %41 = vsyncadd [#allocation8], 0
      %s42 = sshll.u32 %s4, 4
      %s43 = int_to_ptr.hbm [resolvable:$true] %s42
      %s44 = sshll.u32 [#allocation7], 4
      %s45 = int_to_ptr.vmem [resolvable:$true] %s44
      %50 = dma.hbm_to_vmem [thread:$0]  %s43, 6912, %s45, [#allocation8], 128, 128, 8
    $region21: #{tpu_custom_call.1} parent=1 // pred_fallthru
      _
    // Predicated region
    $region22: #{tpu_custom_call.1} parent=1 // pred_check
      _
    $region23: #{tpu_custom_call.1} parent=1 // pred_check_branch
      %52 = sbr.rel (0) target = $region25
    $region24: #{tpu_custom_call.1} parent=1 // pred_region
      _
    $region25: #{tpu_custom_call.1} parent=1 // pred_fallthru
      _
    // Predicated region
    $region26: #{tpu_custom_call.1} parent=1 // pred_check
      _
    $region27: #{tpu_custom_call.1} parent=1 // pred_check_branch
      %54 = sbr.rel (0) target = $region29
    $region28: #{tpu_custom_call.1} parent=1 // pred_region
      _
    $region29: #{tpu_custom_call.1} parent=1 // pred_fallthru
      _
    // Predicated region
    $region30: #{tpu_custom_call.1} parent=1 // pred_check
      _
    $region31: #{tpu_custom_call.1} parent=1 // pred_check_branch
      %56 = sbr.rel (0) target = $region33
    $region32: #{tpu_custom_call.1} parent=1 // pred_region
      _
    $region33: #{tpu_custom_call.1} parent=1 // pred_fallthru
      _
    // Predicated region
    $region34: #{tpu_custom_call.1} parent=1 // pred_check
      _
    $region35: #{tpu_custom_call.1} parent=1 // pred_check_branch
      %58 = sbr.rel (0) target = $region37
    $region36: #{tpu_custom_call.1} parent=1 // pred_region
      _
    $region37: #{tpu_custom_call.1} parent=1 // pred_fallthru
      _
    // Predicated region
    $region38: #{tpu_custom_call.1} parent=1 // pred_check
      _
    $region39: #{tpu_custom_call.1} parent=1 // pred_check_branch
      %60 = sbr.rel (0) target = $region41
    $region40: #{tpu_custom_call.1} parent=1 // pred_region
      _
    $region41: #{tpu_custom_call.1} parent=1 // pred_fallthru
      _
    // Predicated region
    $region42: #{tpu_custom_call.1} parent=1 // pred_check
      _
    $region43: #{tpu_custom_call.1} parent=1 // pred_check_branch
      %62 = sbr.rel (0) target = $region45
    $region44: #{tpu_custom_call.1} parent=1 // pred_region
      _
    $region45: #{tpu_custom_call.1} parent=1 // pred_fallthru
      _
    // Predicated region
    $region46: #{tpu_custom_call.1} parent=1 // pred_check
      _
    $region47: #{tpu_custom_call.1} parent=1 // pred_check_branch
      %64 = sbr.rel (0) target = $region49
    $region48: #{tpu_custom_call.1} parent=1 // pred_region
      %66 = dma.done [#allocation5], 3456
    $region49: #{tpu_custom_call.1} parent=1 // pred_fallthru
      _
    // Predicated region
    $region50: #{tpu_custom_call.1} parent=1 // pred_check
      _
    $region51: #{tpu_custom_call.1} parent=1 // pred_check_branch
      %68 = sbr.rel (0) target = $region53
    $region52: #{tpu_custom_call.1} parent=1 // pred_region
      %70 = dma.done [#allocation8], 6912
    $region53: #{tpu_custom_call.1} parent=1 // pred_fallthru
      _
    %vm71 = vcmask 581632
    %72 = vst.msk [vmem:[#allocation2] sm:$0x1] %vm71, 0.0
    %73 = vst.msk [vmem:[#allocation2 + $0x18] sm:$0x1] %vm71, 0.0
    %74 = vst.msk [vmem:[#allocation2 + $0x11] sm:$0x1] %vm71, 0.0
    %75 = vst.msk [vmem:[#allocation2 + $0x29] sm:$0x1] %vm71, 0.0
    %vm76 = vcmask 31744
    %77 = vst.msk [vmem:[#allocation2] sm:$0xff] %vm76, 0.0
    %78 = vst.msk [vmem:[#allocation2 + $0x8] sm:$0xff] %vm76, 0.0
    %vm79 = vcmask 25600
    %80 = vst.msk [vmem:[#allocation2 + $0x10] sm:$0x3] %vm79, 0.0
    %81 = vst.msk [vmem:[#allocation2 + $0x18] sm:$0xff] %vm76, 0.0
    %82 = vst.msk [vmem:[#allocation2 + $0x20] sm:$0xff] %vm76, 0.0
    %83 = vst.msk [vmem:[#allocation2 + $0x28] sm:$0x3] %vm79, 0.0
    %vm84 = vcmask 589344
    %85 = vst.msk [vmem:[#allocation2] sm:$0xff] %vm84, 0.0
    %86 = vst.msk [vmem:[#allocation2 + $0x8] sm:$0xff] %vm84, 0.0
    %vm87 = vcmask 583200
    %88 = vst.msk [vmem:[#allocation2 + $0x10] sm:$0x3] %vm87, 0.0
    %89 = vst.msk [vmem:[#allocation2 + $0x18] sm:$0xff] %vm84, 0.0
    %90 = vst.msk [vmem:[#allocation2 + $0x20] sm:$0xff] %vm84, 0.0
    %91 = vst.msk [vmem:[#allocation2 + $0x28] sm:$0x3] %vm87, 0.0
    %v92 = vld [vmem:[%s0] sm:$0xff]
    %v93 = vld [vmem:[%s0 + $0x8] sm:$0xff]
    %v94 = vld [vmem:[%s0 + $0x10] sm:$0xff]
    %v95 = vld [vmem:[%s0 + $0x18] sm:$0xff]
    %100 = vrot.lane.b32.xlu0 %v92, 4
    %v101 = vpop.permute.xlu0 %100
    %102 = vrot.lane.b32.xlu0 %v93, 4
    %v103 = vpop.permute.xlu0 %102
    %104 = vrot.lane.b32.xlu0 %v94, 4
    %v105 = vpop.permute.xlu0 %104
    %106 = vrot.lane.b32.xlu0 %v95, 4
    %v107 = vpop.permute.xlu0 %106
    %vm112 = vcmask 556064
    %113 = vst.msk [vmem:[#allocation2 + $0x1] sm:$0xff] %vm112, %v101
    %114 = vst.msk [vmem:[#allocation2 + $0x9] sm:$0xff] %vm112, %v103
    %115 = vst.msk [vmem:[#allocation2 + $0x19] sm:$0xff] %vm112, %v105
    %116 = vst.msk [vmem:[#allocation2 + $0x21] sm:$0xff] %vm112, %v107
    %v117 = vld [vmem:[#allocation2] sm:$0xff]
    %v118 = vld [vmem:[#allocation2 + $0x8] sm:$0xff]
    %v119 = vld [vmem:[#allocation2 + $0x18] sm:$0xff]
    %v120 = vld [vmem:[#allocation2 + $0x20] sm:$0xff]
    %v121 = vld [vmem:[#allocation4] sm:$0xff]
    %v122 = vld [vmem:[#allocation4 + $0x8] sm:$0xff]
    %v123 = vld [vmem:[#allocation4 + $0x10] sm:$0xff]
    %v124 = vld [vmem:[#allocation4 + $0x18] sm:$0xff]
    %v125 = vld [vmem:[#allocation4 + $0x20] sm:$0xff]
    %v126 = vld [vmem:[#allocation4 + $0x28] sm:$0xff]
    %v127 = vld [vmem:[#allocation4 + $0x30] sm:$0xff]
    %v128 = vld [vmem:[#allocation4 + $0x38] sm:$0xff]
    %v129 = vld [vmem:[#allocation4 + $0x40] sm:$0xff]
    %v130 = vld [vmem:[#allocation2 + $0x1] sm:$0xff]
    %v131 = vld [vmem:[#allocation2 + $0x9] sm:$0xff]
    %v132 = vld [vmem:[#allocation2 + $0x19] sm:$0xff]
    %v133 = vld [vmem:[#allocation2 + $0x21] sm:$0xff]
    %s134 = scalar_lea.vmem [#allocation4], 72
    %v135 = vld [vmem:[%s134] sm:$0xff]
    %v136 = vld [vmem:[%s134 + $0x8] sm:$0xff]
    %v137 = vld [vmem:[%s134 + $0x10] sm:$0xff]
    %v138 = vld [vmem:[%s134 + $0x18] sm:$0xff]
    %v139 = vld [vmem:[%s134 + $0x20] sm:$0xff]
    %v140 = vld [vmem:[%s134 + $0x28] sm:$0xff]
    %v141 = vld [vmem:[%s134 + $0x30] sm:$0xff]
    %v142 = vld [vmem:[%s134 + $0x38] sm:$0xff]
    %v143 = vld [vmem:[%s134 + $0x40] sm:$0xff]
    %vm144 = vcmask 588800
    %v146 = vsel %vm144, %v130, 0
    %v149 = vsel %vm144, %v131, 0
    %v152 = vsel %vm144, %v132, 0
    %v155 = vsel %vm144, %v133, 0
    %157 = vmatpush.msra.mxu0 0.0
    %158 = vmatpush.msra.mxu0 0.0
    %159 = vmatpush.msra.mxu0 0.0
    %160 = vmatpush.msra.mxu0 0.0
    %161 = vmatpush.msra.mxu0 0.0
    %162 = vmatpush.msra.mxu0 0.0
    %163 = vmatpush.msra.mxu0 0.0
    %164 = vmatpush.msra.mxu0 %v143
    %165 = vmatpush.msra.mxu0 %v142
    %166 = vmatpush.msra.mxu0 %v141
    %167 = vmatpush.msra.mxu0 %v140
    %168 = vmatpush.msra.mxu0 %v139
    %169 = vmatpush.msra.mxu0 %v138
    %170 = vmatpush.msra.mxu0 %v137
    %171 = vmatpush.msra.mxu0 %v136
    %172 = vmatpush.msra.mxu0 %v135
    %173 = vmatmul.f32.gmra.mxu0 %v146
    %v174 = vpop.f32.mrf.mxu0
    %v175 = vadd.f32 0.0, %v174
    %176 = vmatmul.f32.gmra.mxu0 %v149
    %v177 = vpop.f32.mrf.mxu0
    %v178 = vadd.f32 0.0, %v177
    %179 = vmatmul.f32.gmra.mxu0 %v152
    %v180 = vpop.f32.mrf.mxu0
    %v181 = vadd.f32 0.0, %v180
    %182 = vmatmul.f32.gmra.mxu0 %v155
    %v183 = vpop.f32.mrf.mxu0
    %v184 = vadd.f32 0.0, %v183
    %185 = vdwg.mxu0
    %v187 = vsel %vm144, %v117, 0
    %v190 = vsel %vm144, %v118, 0
    %v193 = vsel %vm144, %v119, 0
    %v196 = vsel %vm144, %v120, 0
    %198 = vmatpush.msra.mxu0 0.0
    %199 = vmatpush.msra.mxu0 0.0
    %200 = vmatpush.msra.mxu0 0.0
    %201 = vmatpush.msra.mxu0 0.0
    %202 = vmatpush.msra.mxu0 0.0
    %203 = vmatpush.msra.mxu0 0.0
    %204 = vmatpush.msra.mxu0 0.0
    %205 = vmatpush.msra.mxu0 %v129
    %206 = vmatpush.msra.mxu0 %v128
    %207 = vmatpush.msra.mxu0 %v127
    %208 = vmatpush.msra.mxu0 %v126
    %209 = vmatpush.msra.mxu0 %v125
    %210 = vmatpush.msra.mxu0 %v124
    %211 = vmatpush.msra.mxu0 %v123
    %212 = vmatpush.msra.mxu0 %v122
    %213 = vmatpush.msra.mxu0 %v121
    %214 = vmatmul.f32.gmra.mxu0 %v187
    %v215 = vpop.f32.mrf.mxu0
    %v216 = vadd.f32 %v175, %v215
    %217 = vmatmul.f32.gmra.mxu0 %v190
    %v218 = vpop.f32.mrf.mxu0
    %v219 = vadd.f32 %v178, %v218
    %220 = vmatmul.f32.gmra.mxu0 %v193
    %v221 = vpop.f32.mrf.mxu0
    %v222 = vadd.f32 %v181, %v221
    %223 = vmatmul.f32.gmra.mxu0 %v196
    %v224 = vpop.f32.mrf.mxu0
    %v225 = vadd.f32 %v184, %v224
    %226 = vdwg.mxu0
    %v227 = vld [vmem:[#allocation2 + $0x2] sm:$0xff]
    %v228 = vld [vmem:[#allocation2 + $0xa] sm:$0xff]
    %v229 = vld [vmem:[#allocation2 + $0x1a] sm:$0xff]
    %v230 = vld [vmem:[#allocation2 + $0x22] sm:$0xff]
    %s231 = scalar_lea.vmem [#allocation4], 144
    %v232 = vld [vmem:[%s231] sm:$0xff]
    %v233 = vld [vmem:[%s231 + $0x8] sm:$0xff]
    %v234 = vld [vmem:[%s231 + $0x10] sm:$0xff]
    %v235 = vld [vmem:[%s231 + $0x18] sm:$0xff]
    %v236 = vld [vmem:[%s231 + $0x20] sm:$0xff]
    %v237 = vld [vmem:[%s231 + $0x28] sm:$0xff]
    %v238 = vld [vmem:[%s231 + $0x30] sm:$0xff]
    %v239 = vld [vmem:[%s231 + $0x38] sm:$0xff]
    %v240 = vld [vmem:[%s231 + $0x40] sm:$0xff]
    %v242 = vsel %vm144, %v227, 0
    %v245 = vsel %vm144, %v228, 0
    %v248 = vsel %vm144, %v229, 0
    %v251 = vsel %vm144, %v230, 0
    %253 = vmatpush.msra.mxu0 0.0
    %254 = vmatpush.msra.mxu0 0.0
    %255 = vmatpush.msra.mxu0 0.0
    %256 = vmatpush.msra.mxu0 0.0
    %257 = vmatpush.msra.mxu0 0.0
    %258 = vmatpush.msra.mxu0 0.0
    %259 = vmatpush.msra.mxu0 0.0
    %260 = vmatpush.msra.mxu0 %v240
    %261 = vmatpush.msra.mxu0 %v239
    %262 = vmatpush.msra.mxu0 %v238
    %263 = vmatpush.msra.mxu0 %v237
    %264 = vmatpush.msra.mxu0 %v236
    %265 = vmatpush.msra.mxu0 %v235
    %266 = vmatpush.msra.mxu0 %v234
    %267 = vmatpush.msra.mxu0 %v233
    %268 = vmatpush.msra.mxu0 %v232
    %269 = vmatmul.f32.gmra.mxu0 %v242
    %v270 = vpop.f32.mrf.mxu0
    %v271 = vadd.f32 0.0, %v270
    %272 = vmatmul.f32.gmra.mxu0 %v245
    %v273 = vpop.f32.mrf.mxu0
    %v274 = vadd.f32 0.0, %v273
    %275 = vmatmul.f32.gmra.mxu0 %v248
    %v276 = vpop.f32.mrf.mxu0
    %v277 = vadd.f32 0.0, %v276
    %278 = vmatmul.f32.gmra.mxu0 %v251
    %v279 = vpop.f32.mrf.mxu0
    %v280 = vadd.f32 0.0, %v279
    %281 = vdwg.mxu0
    %v282 = vadd.f32 %v216, %v271
    %v283 = vadd.f32 %v219, %v274
    %v284 = vadd.f32 %v222, %v277
    %v285 = vadd.f32 %v225, %v280
    %v286 = vadd.f32 %v282, %v283
    %v287 = vadd.f32 %v286, %v284
    %v288 = vadd.f32 %v287, %v285
    %v289 = vrot.slane %v288, 4
    %v290 = vadd.f32 %v288, %v289
    %v291 = vrot.slane %v290, 2
    %v292 = vadd.f32 %v290, %v291
    %v293 = vrot.slane %v292, 1
    %v294 = vadd.f32 %v292, %v293
    %v295 = vmul.f32 %v282, %v282
    %v296 = vmul.f32 %v283, %v283
    %v297 = vmul.f32 %v284, %v284
    %v298 = vmul.f32 %v285, %v285
    %v299 = vadd.f32 %v295, %v296
    %v300 = vadd.f32 %v299, %v297
    %v301 = vadd.f32 %v300, %v298
    %v302 = vrot.slane %v301, 4
    %v303 = vadd.f32 %v301, %v302
    %v304 = vrot.slane %v303, 2
    %v305 = vadd.f32 %v303, %v304
    %v306 = vrot.slane %v305, 1
    %v307 = vadd.f32 %v305, %v306
    %v308 = vld [vmem:[%s7] sm:$0xff]
    %v309 = vld [vmem:[%s7 + $0x8] sm:$0xff]
    %v310 = vld [vmem:[%s7 + $0x10] sm:$0xff]
    %v311 = vld [vmem:[%s7 + $0x18] sm:$0xff]
    %v312 = vld [vmem:[%s7 + $0x20] sm:$0xff]
    %v313 = vld [vmem:[%s7 + $0x28] sm:$0xff]
    %v314 = vld [vmem:[%s7 + $0x30] sm:$0xff]
    %v315 = vld [vmem:[%s7 + $0x38] sm:$0xff]
    %v316 = vld [vmem:[%s7 + $0x40] sm:$0xff]
    %v317 = vld [vmem:[%s7 + $0x48] sm:$0xff]
    %v318 = vld [vmem:[%s7 + $0x50] sm:$0xff]
    %v319 = vld [vmem:[%s7 + $0x58] sm:$0xff]
    %v320 = vld [vmem:[%s7 + $0x60] sm:$0xff]
    %v321 = vld [vmem:[%s7 + $0x68] sm:$0xff]
    %v322 = vld [vmem:[%s7 + $0x70] sm:$0xff]
    %v323 = vld [vmem:[%s7 + $0x78] sm:$0xff]
    %324 = vmatpush.msra.mxu0 %v323
    %325 = vmatpush.msra.mxu0 %v322
    %326 = vmatpush.msra.mxu0 %v321
    %327 = vmatpush.msra.mxu0 %v320
    %328 = vmatpush.msra.mxu0 %v319
    %329 = vmatpush.msra.mxu0 %v318
    %330 = vmatpush.msra.mxu0 %v317
    %331 = vmatpush.msra.mxu0 %v316
    %332 = vmatpush.msra.mxu0 %v315
    %333 = vmatpush.msra.mxu0 %v314
    %334 = vmatpush.msra.mxu0 %v313
    %335 = vmatpush.msra.mxu0 %v312
    %336 = vmatpush.msra.mxu0 %v311
    %337 = vmatpush.msra.mxu0 %v310
    %338 = vmatpush.msra.mxu0 %v309
    %339 = vmatpush.msra.mxu0 %v308
    %340 = vmatmul.f32.gmra.mxu0 %v294
    %v341 = vpop.f32.mrf.mxu0
    %v342 = vadd.f32 0.0, %v341
    %343 = vdwg.mxu0
    %344 = vmatpush.msra.mxu0 %v323
    %345 = vmatpush.msra.mxu0 %v322
    %346 = vmatpush.msra.mxu0 %v321
    %347 = vmatpush.msra.mxu0 %v320
    %348 = vmatpush.msra.mxu0 %v319
    %349 = vmatpush.msra.mxu0 %v318
    %350 = vmatpush.msra.mxu0 %v317
    %351 = vmatpush.msra.mxu0 %v316
    %352 = vmatpush.msra.mxu0 %v315
    %353 = vmatpush.msra.mxu0 %v314
    %354 = vmatpush.msra.mxu0 %v313
    %355 = vmatpush.msra.mxu0 %v312
    %356 = vmatpush.msra.mxu0 %v311
    %357 = vmatpush.msra.mxu0 %v310
    %358 = vmatpush.msra.mxu0 %v309
    %359 = vmatpush.msra.mxu0 %v308
    %360 = vmatmul.f32.gmra.mxu0 %v307
    %v361 = vpop.f32.mrf.mxu0
    %v362 = vadd.f32 0.0, %v361
    %363 = vdwg.mxu0
    %v364 = vmul.f32 %v342, 0.001953125
    %v365 = vmul.f32 %v362, 0.001953125
    %v366 = vmul.f32 %v364, %v364
    %v367 = vsub.f32 %v365, %v366
    %v368 = vld [vmem:[%s2] sm:$0x1]
    %v369 = vadd.f32 %v367, 1e-05
    %v370 = vrsqrt.pop %v369
    %v371 = vmul.f32 %v370, %v369
    %v372 = vmul.f32 %v371, %v370
    %v373 = vmul.f32 0.5, %v372
    %v374 = vsub.f32 1.5, %v373
    %v375 = vmul.f32 %v370, %v374
    %vm376 = vweird.f32 %v369
    %vm377 = vweird.f32 %v370
    %vm378 = vmor %vm376, %vm377
    %v379 = vsel %vm378, %v370, %v375
    %v380 = vmul.f32 %v368, %v379
    %v381 = vld [vmem:[%s3] sm:$0x1]
    %v382 = vmul.f32 %v364, %v380
    %v383 = vsub.f32 %v381, %v382
    %v384 = vld [vmem:[%s8] sm:$0xff]
    %vm385 = vcmask 64512
    %v387 = vsel %vm385, %v380, 0
    %389 = vmatpush.msra.mxu0 0.0
    %390 = vmatpush.msra.mxu0 0.0
    %391 = vmatpush.msra.mxu0 0.0
    %392 = vmatpush.msra.mxu0 0.0
    %393 = vmatpush.msra.mxu0 0.0
    %394 = vmatpush.msra.mxu0 0.0
    %395 = vmatpush.msra.mxu0 0.0
    %396 = vmatpush.msra.mxu0 0.0
    %397 = vmatpush.msra.mxu0 0.0
    %398 = vmatpush.msra.mxu0 0.0
    %399 = vmatpush.msra.mxu0 0.0
    %400 = vmatpush.msra.mxu0 0.0
    %401 = vmatpush.msra.mxu0 0.0
    %402 = vmatpush.msra.mxu0 0.0
    %403 = vmatpush.msra.mxu0 0.0
    %404 = vmatpush.msra.mxu0 %v384
    %405 = vmatmul.f32.gmra.mxu0 %v387
    %v406 = vpop.f32.mrf.mxu0
    %v407 = vadd.f32 0.0, %v406
    %408 = vdwg.mxu0
    %v410 = vsel %vm385, %v383, 0
    %412 = vmatpush.msra.mxu0 0.0
    %413 = vmatpush.msra.mxu0 0.0
    %414 = vmatpush.msra.mxu0 0.0
    %415 = vmatpush.msra.mxu0 0.0
    %416 = vmatpush.msra.mxu0 0.0
    %417 = vmatpush.msra.mxu0 0.0
    %418 = vmatpush.msra.mxu0 0.0
    %419 = vmatpush.msra.mxu0 0.0
    %420 = vmatpush.msra.mxu0 0.0
    %421 = vmatpush.msra.mxu0 0.0
    %422 = vmatpush.msra.mxu0 0.0
    %423 = vmatpush.msra.mxu0 0.0
    %424 = vmatpush.msra.mxu0 0.0
    %425 = vmatpush.msra.mxu0 0.0
    %426 = vmatpush.msra.mxu0 0.0
    %427 = vmatpush.msra.mxu0 %v384
    %428 = vmatmul.f32.gmra.mxu0 %v410
    %v429 = vpop.f32.mrf.mxu0
    %v430 = vadd.f32 0.0, %v429
    %431 = vdwg.mxu0
    %v432 = vperm.slane %v407, 0
    %v433 = vmul.f32 %v282, %v432
    %v434 = vmul.f32 %v283, %v432
    %v435 = vmul.f32 %v284, %v432
    %v436 = vmul.f32 %v285, %v432
    %v437 = vperm.slane %v430, 0
    %v438 = vadd.f32 %v433, %v437
    %v439 = vadd.f32 %v434, %v437
    %v440 = vadd.f32 %v435, %v437
    %v441 = vadd.f32 %v436, %v437
    %v442 = vmul.f32 %v438, 0.5
    %v443 = vmul.f32 %v439, 0.5
    %v444 = vmul.f32 %v440, 0.5
    %v445 = vmul.f32 %v441, 0.5
    %v446 = vrcp.pop 1.4142135
    %v447 = vmul.f32 1.4142135, %v446
    %v448 = vsub.f32 1.0, %v447
    %v449 = vmul.f32 %v446, %v448
    %v450 = vadd.f32 %v446, %v449
    %vm451 = vweird.f32 %v446
    %v452 = vsel %vm451, %v446, %v450
    %v453 = vmul.f32 %v438, %v452
    %v454 = vmul.f32 %v439, %v452
    %v455 = vmul.f32 %v440, %v452
    %v456 = vmul.f32 %v441, %v452
    %v457 = vmul.f32 %v453, %v453
    %v458 = vmin.f32 16.0, %v457
    %v459 = vmul.f32 %v458, 2.1237322e-06
    %v460 = vadd.f32 %v459, 0.00028619796
    %v461 = vmul.f32 %v458, %v460
    %v462 = vadd.f32 %v461, 0.0036580483
    %v463 = vmul.f32 %v458, %v462
    %v464 = vadd.f32 %v463, 0.05243302
    %v465 = vmul.f32 %v458, %v464
    %v466 = vadd.f32 %v465, 0.18741608
    %v467 = vmul.f32 %v458, %v466
    %v468 = vadd.f32 %v467, 1.1283791
    %v469 = vmul.f32 %v453, %v468
    %v470 = vmul.f32 %v458, 3.8918573e-05
    %v471 = vadd.f32 %v470, 0.001143296
    %v472 = vmul.f32 %v458, %v471
    %v473 = vadd.f32 %v472, 0.014752088
    %v474 = vmul.f32 %v458, %v473
    %v475 = vadd.f32 %v474, 0.112945676
    %v476 = vmul.f32 %v458, %v475
    %v477 = vadd.f32 %v476, 0.4994258
    %v478 = vmul.f32 %v458, %v477
    %v479 = vadd.f32 %v478, 1.0
    %v480 = vrcp.pop %v479
    %v481 = vmul.f32 %v479, %v480
    %v482 = vsub.f32 1.0, %v481
    %v483 = vmul.f32 %v480, %v482
    %v484 = vadd.f32 %v480, %v483
    %vm485 = vweird.f32 %v479
    %vm486 = vweird.f32 %v480
    %vm487 = vmor %vm485, %vm486
    %v488 = vsel %vm487, %v480, %v484
    %v489 = vand.u32 2147483647, %v479
    %vm490 = vcmp.eq.f32.partialorder %v489, 8.507059e+37
    %v491 = vand.u32 %v479, 2147483648
    %v492 = vor.u32 1.1754944e-38, %v491
    %v493 = vsel %vm490, %v492, %v488
    %v494 = vmul.f32 %v469, %v493
    %v495 = vmin.f32 %v494, 1.0
    %v496 = vmax.f32 %v495, -1.0
    %v497 = vmul.f32 %v454, %v454
    %v498 = vmin.f32 16.0, %v497
    %v499 = vmul.f32 %v498, 2.1237322e-06
    %v500 = vadd.f32 %v499, 0.00028619796
    %v501 = vmul.f32 %v498, %v500
    %v502 = vadd.f32 %v501, 0.0036580483
    %v503 = vmul.f32 %v498, %v502
    %v504 = vadd.f32 %v503, 0.05243302
    %v505 = vmul.f32 %v498, %v504
    %v506 = vadd.f32 %v505, 0.18741608
    %v507 = vmul.f32 %v498, %v506
    %v508 = vadd.f32 %v507, 1.1283791
    %v509 = vmul.f32 %v454, %v508
    %v510 = vmul.f32 %v498, 3.8918573e-05
    %v511 = vadd.f32 %v510, 0.001143296
    %v512 = vmul.f32 %v498, %v511
    %v513 = vadd.f32 %v512, 0.014752088
    %v514 = vmul.f32 %v498, %v513
    %v515 = vadd.f32 %v514, 0.112945676
    %v516 = vmul.f32 %v498, %v515
    %v517 = vadd.f32 %v516, 0.4994258
    %v518 = vmul.f32 %v498, %v517
    %v519 = vadd.f32 %v518, 1.0
    %v520 = vrcp.pop %v519
    %v521 = vmul.f32 %v519, %v520
    %v522 = vsub.f32 1.0, %v521
    %v523 = vmul.f32 %v520, %v522
    %v524 = vadd.f32 %v520, %v523
    %vm525 = vweird.f32 %v519
    %vm526 = vweird.f32 %v520
    %vm527 = vmor %vm525, %vm526
    %v528 = vsel %vm527, %v520, %v524
    %v529 = vand.u32 2147483647, %v519
    %vm530 = vcmp.eq.f32.partialorder %v529, 8.507059e+37
    %v531 = vand.u32 %v519, 2147483648
    %v532 = vor.u32 1.1754944e-38, %v531
    %v533 = vsel %vm530, %v532, %v528
    %v534 = vmul.f32 %v509, %v533
    %v535 = vmin.f32 %v534, 1.0
    %v536 = vmax.f32 %v535, -1.0
    %v537 = vmul.f32 %v455, %v455
    %v538 = vmin.f32 16.0, %v537
    %v539 = vmul.f32 %v538, 2.1237322e-06
    %v540 = vadd.f32 %v539, 0.00028619796
    %v541 = vmul.f32 %v538, %v540
    %v542 = vadd.f32 %v541, 0.0036580483
    %v543 = vmul.f32 %v538, %v542
    %v544 = vadd.f32 %v543, 0.05243302
    %v545 = vmul.f32 %v538, %v544
    %v546 = vadd.f32 %v545, 0.18741608
    %v547 = vmul.f32 %v538, %v546
    %v548 = vadd.f32 %v547, 1.1283791
    %v549 = vmul.f32 %v455, %v548
    %v550 = vmul.f32 %v538, 3.8918573e-05
    %v551 = vadd.f32 %v550, 0.001143296
    %v552 = vmul.f32 %v538, %v551
    %v553 = vadd.f32 %v552, 0.014752088
    %v554 = vmul.f32 %v538, %v553
    %v555 = vadd.f32 %v554, 0.112945676
    %v556 = vmul.f32 %v538, %v555
    %v557 = vadd.f32 %v556, 0.4994258
    %v558 = vmul.f32 %v538, %v557
    %v559 = vadd.f32 %v558, 1.0
    %v560 = vrcp.pop %v559
    %v561 = vmul.f32 %v559, %v560
    %v562 = vsub.f32 1.0, %v561
    %v563 = vmul.f32 %v560, %v562
    %v564 = vadd.f32 %v560, %v563
    %vm565 = vweird.f32 %v559
    %vm566 = vweird.f32 %v560
    %vm567 = vmor %vm565, %vm566
    %v568 = vsel %vm567, %v560, %v564
    %v569 = vand.u32 2147483647, %v559
    %vm570 = vcmp.eq.f32.partialorder %v569, 8.507059e+37
    %v571 = vand.u32 %v559, 2147483648
    %v572 = vor.u32 1.1754944e-38, %v571
    %v573 = vsel %vm570, %v572, %v568
    %v574 = vmul.f32 %v549, %v573
    %v575 = vmin.f32 %v574, 1.0
    %v576 = vmax.f32 %v575, -1.0
    %v577 = vmul.f32 %v456, %v456
    %v578 = vmin.f32 16.0, %v577
    %v579 = vmul.f32 %v578, 2.1237322e-06
    %v580 = vadd.f32 %v579, 0.00028619796
    %v581 = vmul.f32 %v578, %v580
    %v582 = vadd.f32 %v581, 0.0036580483
    %v583 = vmul.f32 %v578, %v582
    %v584 = vadd.f32 %v583, 0.05243302
    %v585 = vmul.f32 %v578, %v584
    %v586 = vadd.f32 %v585, 0.18741608
    %v587 = vmul.f32 %v578, %v586
    %v588 = vadd.f32 %v587, 1.1283791
    %v589 = vmul.f32 %v456, %v588
    %v590 = vmul.f32 %v578, 3.8918573e-05
    %v591 = vadd.f32 %v590, 0.001143296
    %v592 = vmul.f32 %v578, %v591
    %v593 = vadd.f32 %v592, 0.014752088
    %v594 = vmul.f32 %v578, %v593
    %v595 = vadd.f32 %v594, 0.112945676
    %v596 = vmul.f32 %v578, %v595
    %v597 = vadd.f32 %v596, 0.4994258
    %v598 = vmul.f32 %v578, %v597
    %v599 = vadd.f32 %v598, 1.0
    %v600 = vrcp.pop %v599
    %v601 = vmul.f32 %v599, %v600
    %v602 = vsub.f32 1.0, %v601
    %v603 = vmul.f32 %v600, %v602
    %v604 = vadd.f32 %v600, %v603
    %vm605 = vweird.f32 %v599
    %vm606 = vweird.f32 %v600
    %vm607 = vmor %vm605, %vm606
    %v608 = vsel %vm607, %v600, %v604
    %v609 = vand.u32 2147483647, %v599
    %vm610 = vcmp.eq.f32.partialorder %v609, 8.507059e+37
    %v611 = vand.u32 %v599, 2147483648
    %v612 = vor.u32 1.1754944e-38, %v611
    %v613 = vsel %vm610, %v612, %v608
    %v614 = vmul.f32 %v589, %v613
    %v615 = vmin.f32 %v614, 1.0
    %v616 = vmax.f32 %v615, -1.0
    %v617 = vadd.f32 %v496, 1.0
    %v618 = vadd.f32 %v536, 1.0
    %v619 = vadd.f32 %v576, 1.0
    %v620 = vadd.f32 %v616, 1.0
    %v621 = vmul.f32 %v442, %v617
    %v622 = vmul.f32 %v443, %v618
    %v623 = vmul.f32 %v444, %v619
    %v624 = vmul.f32 %v445, %v620
    %v625 = vlaneseq
    %vm626 = vcmp.ge.s32.totalorder %v625, 0
    %vm627 = vcmp.lt.s32.totalorder %v625, 144
    %vm628 = vmand %vm626, %vm627
    %629 = vst.msk [vmem:[#allocation3] ss:$8 sm:$0x3] %vm628, 0.0
    %630 = vst.msk [vmem:[#allocation3] ss:$8 sm:$0x0] %vm628, 0.0
    %s631 = scalar_lea.vmem [#allocation3], 48
    %632 = vst.msk [vmem:[%s631] ss:$8 sm:$0x3] %vm628, 0.0
    %633 = vst.msk [vmem:[%s631] ss:$8 sm:$0x0] %vm628, 0.0
    %s634 = scalar_lea.vmem [#allocation3], 33
    %635 = vst.msk [vmem:[%s634] ss:$8 sm:$0x3] %vm628, 0.0
    %636 = vst.msk [vmem:[%s634] ss:$8 sm:$0x0] %vm628, 0.0
    %s637 = scalar_lea.vmem [#allocation3], 81
    %638 = vst.msk [vmem:[%s637] ss:$8 sm:$0x3] %vm628, 0.0
    %639 = vst.msk [vmem:[%s637] ss:$8 sm:$0x0] %vm628, 0.0
    %640 = vst.msk [vmem:[#allocation3] sm:$0xff] %vm385, 0.0
    %641 = vst.msk [vmem:[#allocation3 + $0x10] sm:$0xff] %vm385, 0.0
    %vm642 = vcmask 58368
    %643 = vst.msk [vmem:[#allocation3 + $0x20] sm:$0x3] %vm642, 0.0
    %644 = vst.msk [vmem:[#allocation3 + $0x30] sm:$0xff] %vm385, 0.0
    %645 = vst.msk [vmem:[#allocation3 + $0x40] sm:$0xff] %vm385, 0.0
    %646 = vst.msk [vmem:[#allocation3 + $0x50] sm:$0x3] %vm642, 0.0
    %vm647 = vcmask 130112
    %648 = vst.msk [vmem:[#allocation3 + $0x8] sm:$0xff] %vm647, 0.0
    %649 = vst.msk [vmem:[#allocation3 + $0x18] sm:$0xff] %vm647, 0.0
    %vm650 = vcmask 123968
    %651 = vst.msk [vmem:[#allocation3 + $0x28] sm:$0x3] %vm650, 0.0
    %652 = vst.msk [vmem:[#allocation3 + $0x38] sm:$0xff] %vm647, 0.0
    %653 = vst.msk [vmem:[#allocation3 + $0x48] sm:$0xff] %vm647, 0.0
    %654 = vst.msk [vmem:[#allocation3 + $0x58] sm:$0x3] %vm650, 0.0
    %vm659 = vcmask 1040384
    %v660 = vrot.slane %v621, 7
    %v661 = vrot.slane %v622, 7
    %v662 = vsel %vm659, %v660, %v661
    %v663 = vrot.slane %v623, 7
    %v664 = vrot.slane %v624, 7
    %v665 = vsel %vm659, %v663, %v664
    %666 = vrot.lane.b32.xlu0 %v660, 8
    %v667 = vpop.permute.xlu0 %666
    %668 = vrot.lane.b32.xlu0 %v662, 8
    %v669 = vpop.permute.xlu0 %668
    %670 = vrot.lane.b32.xlu0 %v661, 8
    %v671 = vpop.permute.xlu0 %670
    %672 = vrot.lane.b32.xlu0 %v663, 8
    %v673 = vpop.permute.xlu0 %672
    %674 = vrot.lane.b32.xlu0 %v665, 8
    %v675 = vpop.permute.xlu0 %674
    %676 = vrot.lane.b32.xlu0 %v664, 8
    %v677 = vpop.permute.xlu0 %676
    %vm684 = vcmask 1047617
    %685 = vst.msk [vmem:[#allocation3] sm:$0xfe] %vm684, %v667
    %vm686 = vcmask 64513
    %687 = vst.msk [vmem:[#allocation3 + $0x8] sm:$0xfe] %vm686, %v667
    %vm688 = vcmask 1047616
    %689 = vst.msk [vmem:[#allocation3 + $0x10] sm:$0xff] %vm688, %v669
    %690 = vst.msk [vmem:[#allocation3 + $0x18] sm:$0xff] %vm385, %v669
    %vm691 = vcmask 1040448
    %692 = vst.msk [vmem:[#allocation3 + $0x20] sm:$0x1] %vm691, %v671
    %vm693 = vcmask 57344
    %694 = vst.msk [vmem:[#allocation3 + $0x28] sm:$0x1] %vm693, %v671
    %695 = vst.msk [vmem:[#allocation3 + $0x30] sm:$0xfe] %vm684, %v673
    %696 = vst.msk [vmem:[#allocation3 + $0x38] sm:$0xfe] %vm686, %v673
    %697 = vst.msk [vmem:[#allocation3 + $0x40] sm:$0xff] %vm688, %v675
    %698 = vst.msk [vmem:[#allocation3 + $0x48] sm:$0xff] %vm385, %v675
    %699 = vst.msk [vmem:[#allocation3 + $0x50] sm:$0x1] %vm691, %v677
    %700 = vst.msk [vmem:[#allocation3 + $0x58] sm:$0x1] %vm693, %v677
    %v701 = vld [vmem:[#allocation3] sm:$0xff]
    %v702 = vld [vmem:[#allocation3 + $0x8] sm:$0xff]
    %v703 = vld [vmem:[#allocation3 + $0x10] sm:$0xff]
    %v704 = vld [vmem:[#allocation3 + $0x18] sm:$0xff]
    %v705 = vld [vmem:[#allocation3 + $0x30] sm:$0xff]
    %v706 = vld [vmem:[#allocation3 + $0x38] sm:$0xff]
    %v707 = vld [vmem:[#allocation3 + $0x40] sm:$0xff]
    %v708 = vld [vmem:[#allocation3 + $0x48] sm:$0xff]
    %v709 = vld [vmem:[#allocation7] sm:$0xff]
    %v710 = vld [vmem:[#allocation7 + $0x8] sm:$0xff]
    %v711 = vld [vmem:[#allocation7 + $0x10] sm:$0xff]
    %v712 = vld [vmem:[#allocation7 + $0x18] sm:$0xff]
    %v713 = vld [vmem:[#allocation7 + $0x20] sm:$0xff]
    %v714 = vld [vmem:[#allocation7 + $0x28] sm:$0xff]
    %v715 = vld [vmem:[#allocation7 + $0x30] sm:$0xff]
    %v716 = vld [vmem:[#allocation7 + $0x38] sm:$0xff]
    %v717 = vld [vmem:[#allocation7 + $0x40] sm:$0xff]
    %v718 = vld [vmem:[#allocation7 + $0x48] sm:$0xff]
    %v719 = vld [vmem:[#allocation7 + $0x50] sm:$0xff]
    %v720 = vld [vmem:[#allocation7 + $0x58] sm:$0xff]
    %v721 = vld [vmem:[#allocation7 + $0x60] sm:$0xff]
    %v722 = vld [vmem:[#allocation7 + $0x68] sm:$0xff]
    %v723 = vld [vmem:[#allocation7 + $0x70] sm:$0xff]
    %v724 = vld [vmem:[#allocation7 + $0x78] sm:$0xff]
    %v725 = vld [vmem:[#allocation7 + $0x80] sm:$0xff]
    %v726 = vld [vmem:[#allocation7 + $0x88] sm:$0xff]
    %v727 = vld [vmem:[#allocation3] sm:$0xfe]
    %v728 = vld [vmem:[#allocation3 + $0x8] sm:$0xfe]
    %v729 = vld [vmem:[#allocation3 + $0x20] sm:$0x1]
    %v730 = vld [vmem:[#allocation3 + $0x28] sm:$0x1]
    %v731 = vld [vmem:[#allocation3 + $0x30] sm:$0xfe]
    %v732 = vld [vmem:[#allocation3 + $0x38] sm:$0xfe]
    %v733 = vld [vmem:[#allocation3 + $0x50] sm:$0x1]
    %v734 = vld [vmem:[#allocation3 + $0x58] sm:$0x1]
    %vm747 = vcmask 1046528
    %v748 = vrot.slane %v727, 1
    %v749 = vrot.slane %v703, 1
    %v750 = vsel %vm747, %v748, %v749
    %v751 = vrot.slane %v728, 1
    %v752 = vrot.slane %v704, 1
    %v753 = vsel %vm747, %v751, %v752
    %v754 = vrot.slane %v729, 1
    %v755 = vsel %vm747, %v749, %v754
    %v756 = vrot.slane %v730, 1
    %v757 = vsel %vm747, %v752, %v756
    %v758 = vrot.slane %v731, 1
    %v759 = vrot.slane %v707, 1
    %v760 = vsel %vm747, %v758, %v759
    %v761 = vrot.slane %v732, 1
    %v762 = vrot.slane %v708, 1
    %v763 = vsel %vm747, %v761, %v762
    %v764 = vrot.slane %v733, 1
    %v765 = vsel %vm747, %v759, %v764
    %v766 = vrot.slane %v734, 1
    %v767 = vsel %vm747, %v762, %v766
    %s772 = scalar_lea.vmem [#allocation7], 144
    %v773 = vld [vmem:[%s772] sm:$0xff]
    %v774 = vld [vmem:[%s772 + $0x8] sm:$0xff]
    %v775 = vld [vmem:[%s772 + $0x10] sm:$0xff]
    %v776 = vld [vmem:[%s772 + $0x18] sm:$0xff]
    %v777 = vld [vmem:[%s772 + $0x20] sm:$0xff]
    %v778 = vld [vmem:[%s772 + $0x28] sm:$0xff]
    %v779 = vld [vmem:[%s772 + $0x30] sm:$0xff]
    %v780 = vld [vmem:[%s772 + $0x38] sm:$0xff]
    %v781 = vld [vmem:[%s772 + $0x40] sm:$0xff]
    %v782 = vld [vmem:[%s772 + $0x48] sm:$0xff]
    %v783 = vld [vmem:[%s772 + $0x50] sm:$0xff]
    %v784 = vld [vmem:[%s772 + $0x58] sm:$0xff]
    %v785 = vld [vmem:[%s772 + $0x60] sm:$0xff]
    %v786 = vld [vmem:[%s772 + $0x68] sm:$0xff]
    %v787 = vld [vmem:[%s772 + $0x70] sm:$0xff]
    %v788 = vld [vmem:[%s772 + $0x78] sm:$0xff]
    %v789 = vld [vmem:[%s772 + $0x80] sm:$0xff]
    %v790 = vld [vmem:[%s772 + $0x88] sm:$0xff]
    %vm791 = vcmask 130048
    %v792 = vsel %vm791, %v753, 0
    %v794 = vsel %vm791, %v757, 0
    %v796 = vsel %vm791, %v763, 0
    %v798 = vsel %vm791, %v767, 0
    %800 = vmatpush.msra.mxu0 %v788
    %801 = vmatpush.msra.mxu0 %v787
    %802 = vmatpush.msra.mxu0 %v786
    %803 = vmatpush.msra.mxu0 %v785
    %804 = vmatpush.msra.mxu0 %v784
    %805 = vmatpush.msra.mxu0 %v783
    %806 = vmatpush.msra.mxu0 %v782
    %807 = vmatpush.msra.mxu0 %v781
    %808 = vmatpush.msra.mxu0 %v780
    %809 = vmatpush.msra.mxu0 %v779
    %810 = vmatpush.msra.mxu0 %v778
    %811 = vmatpush.msra.mxu0 %v777
    %812 = vmatpush.msra.mxu0 %v776
    %813 = vmatpush.msra.mxu0 %v775
    %814 = vmatpush.msra.mxu0 %v774
    %815 = vmatpush.msra.mxu0 %v773
    %816 = vmatmul.f32.gmra.mxu0 %v750
    %v817 = vpop.f32.mrf.mxu0
    %v818 = vadd.f32 0.0, %v817
    %819 = vmatmul.f32.gmra.mxu0 %v755
    %v820 = vpop.f32.mrf.mxu0
    %v821 = vadd.f32 0.0, %v820
    %822 = vmatmul.f32.gmra.mxu0 %v760
    %v823 = vpop.f32.mrf.mxu0
    %v824 = vadd.f32 0.0, %v823
    %825 = vmatmul.f32.gmra.mxu0 %v765
    %v826 = vpop.f32.mrf.mxu0
    %v827 = vadd.f32 0.0, %v826
    %828 = vdwg.mxu0
    %829 = vmatpush.msra.mxu0 0.0
    %830 = vmatpush.msra.mxu0 0.0
    %831 = vmatpush.msra.mxu0 0.0
    %832 = vmatpush.msra.mxu0 0.0
    %833 = vmatpush.msra.mxu0 0.0
    %834 = vmatpush.msra.mxu0 0.0
    %835 = vmatpush.msra.mxu0 0.0
    %836 = vmatpush.msra.mxu0 0.0
    %837 = vmatpush.msra.mxu0 0.0
    %838 = vmatpush.msra.mxu0 0.0
    %839 = vmatpush.msra.mxu0 0.0
    %840 = vmatpush.msra.mxu0 0.0
    %841 = vmatpush.msra.mxu0 0.0
    %842 = vmatpush.msra.mxu0 0.0
    %843 = vmatpush.msra.mxu0 %v790
    %844 = vmatpush.msra.mxu0 %v789
    %845 = vmatmul.f32.gmra.mxu0 %v792
    %v846 = vpop.f32.mrf.mxu0
    %v847 = vadd.f32 %v818, %v846
    %848 = vmatmul.f32.gmra.mxu0 %v794
    %v849 = vpop.f32.mrf.mxu0
    %v850 = vadd.f32 %v821, %v849
    %851 = vmatmul.f32.gmra.mxu0 %v796
    %v852 = vpop.f32.mrf.mxu0
    %v853 = vadd.f32 %v824, %v852
    %854 = vmatmul.f32.gmra.mxu0 %v798
    %v855 = vpop.f32.mrf.mxu0
    %v856 = vadd.f32 %v827, %v855
    %857 = vdwg.mxu0
    %v859 = vsel %vm791, %v702, 0
    %v861 = vsel %vm791, %v704, 0
    %v864 = vsel %vm791, %v706, 0
    %v866 = vsel %vm791, %v708, 0
    %868 = vmatpush.msra.mxu0 %v724
    %869 = vmatpush.msra.mxu0 %v723
    %870 = vmatpush.msra.mxu0 %v722
    %871 = vmatpush.msra.mxu0 %v721
    %872 = vmatpush.msra.mxu0 %v720
    %873 = vmatpush.msra.mxu0 %v719
    %874 = vmatpush.msra.mxu0 %v718
    %875 = vmatpush.msra.mxu0 %v717
    %876 = vmatpush.msra.mxu0 %v716
    %877 = vmatpush.msra.mxu0 %v715
    %878 = vmatpush.msra.mxu0 %v714
    %879 = vmatpush.msra.mxu0 %v713
    %880 = vmatpush.msra.mxu0 %v712
    %881 = vmatpush.msra.mxu0 %v711
    %882 = vmatpush.msra.mxu0 %v710
    %883 = vmatpush.msra.mxu0 %v709
    %884 = vmatmul.f32.gmra.mxu0 %v701
    %v885 = vpop.f32.mrf.mxu0
    %v886 = vadd.f32 %v847, %v885
    %887 = vmatmul.f32.gmra.mxu0 %v703
    %v888 = vpop.f32.mrf.mxu0
    %v889 = vadd.f32 %v850, %v888
    %890 = vmatmul.f32.gmra.mxu0 %v705
    %v891 = vpop.f32.mrf.mxu0
    %v892 = vadd.f32 %v853, %v891
    %893 = vmatmul.f32.gmra.mxu0 %v707
    %v894 = vpop.f32.mrf.mxu0
    %v895 = vadd.f32 %v856, %v894
    %896 = vdwg.mxu0
    %897 = vmatpush.msra.mxu0 0.0
    %898 = vmatpush.msra.mxu0 0.0
    %899 = vmatpush.msra.mxu0 0.0
    %900 = vmatpush.msra.mxu0 0.0
    %901 = vmatpush.msra.mxu0 0.0
    %902 = vmatpush.msra.mxu0 0.0
    %903 = vmatpush.msra.mxu0 0.0
    %904 = vmatpush.msra.mxu0 0.0
    %905 = vmatpush.msra.mxu0 0.0
    %906 = vmatpush.msra.mxu0 0.0
    %907 = vmatpush.msra.mxu0 0.0
    %908 = vmatpush.msra.mxu0 0.0
    %909 = vmatpush.msra.mxu0 0.0
    %910 = vmatpush.msra.mxu0 0.0
    %911 = vmatpush.msra.mxu0 %v726
    %912 = vmatpush.msra.mxu0 %v725
    %913 = vmatmul.f32.gmra.mxu0 %v859
    %v914 = vpop.f32.mrf.mxu0
    %v915 = vadd.f32 %v886, %v914
    %916 = vmatmul.f32.gmra.mxu0 %v861
    %v917 = vpop.f32.mrf.mxu0
    %v918 = vadd.f32 %v889, %v917
    %919 = vmatmul.f32.gmra.mxu0 %v864
    %v920 = vpop.f32.mrf.mxu0
    %v921 = vadd.f32 %v892, %v920
    %922 = vmatmul.f32.gmra.mxu0 %v866
    %v923 = vpop.f32.mrf.mxu0
    %v924 = vadd.f32 %v895, %v923
    %925 = vdwg.mxu0
    %v926 = vld [vmem:[#allocation3] sm:$0xfc]
    %v927 = vld [vmem:[#allocation3 + $0x8] sm:$0xfc]
    %v928 = vld [vmem:[#allocation3 + $0x20] sm:$0x3]
    %v929 = vld [vmem:[#allocation3 + $0x28] sm:$0x3]
    %v930 = vld [vmem:[#allocation3 + $0x30] sm:$0xfc]
    %v931 = vld [vmem:[#allocation3 + $0x38] sm:$0xfc]
    %v932 = vld [vmem:[#allocation3 + $0x50] sm:$0x3]
    %v933 = vld [vmem:[#allocation3 + $0x58] sm:$0x3]
    %vm942 = vcmask 1045504
    %v943 = vrot.slane %v926, 2
    %v944 = vrot.slane %v703, 2
    %v945 = vsel %vm942, %v943, %v944
    %v946 = vrot.slane %v927, 2
    %v947 = vrot.slane %v704, 2
    %v948 = vsel %vm942, %v946, %v947
    %v949 = vrot.slane %v928, 2
    %v950 = vsel %vm942, %v944, %v949
    %v951 = vrot.slane %v929, 2
    %v952 = vsel %vm942, %v947, %v951
    %v953 = vrot.slane %v930, 2
    %v954 = vrot.slane %v707, 2
    %v955 = vsel %vm942, %v953, %v954
    %v956 = vrot.slane %v931, 2
    %v957 = vrot.slane %v708, 2
    %v958 = vsel %vm942, %v956, %v957
    %v959 = vrot.slane %v932, 2
    %v960 = vsel %vm942, %v954, %v959
    %v961 = vrot.slane %v933, 2
    %v962 = vsel %vm942, %v957, %v961
    %s967 = scalar_lea.vmem [#allocation7], 288
    %v968 = vld [vmem:[%s967] sm:$0xff]
    %v969 = vld [vmem:[%s967 + $0x8] sm:$0xff]
    %v970 = vld [vmem:[%s967 + $0x10] sm:$0xff]
    %v971 = vld [vmem:[%s967 + $0x18] sm:$0xff]
    %v972 = vld [vmem:[%s967 + $0x20] sm:$0xff]
    %v973 = vld [vmem:[%s967 + $0x28] sm:$0xff]
    %v974 = vld [vmem:[%s967 + $0x30] sm:$0xff]
    %v975 = vld [vmem:[%s967 + $0x38] sm:$0xff]
    %v976 = vld [vmem:[%s967 + $0x40] sm:$0xff]
    %v977 = vld [vmem:[%s967 + $0x48] sm:$0xff]
    %v978 = vld [vmem:[%s967 + $0x50] sm:$0xff]
    %v979 = vld [vmem:[%s967 + $0x58] sm:$0xff]
    %v980 = vld [vmem:[%s967 + $0x60] sm:$0xff]
    %v981 = vld [vmem:[%s967 + $0x68] sm:$0xff]
    %v982 = vld [vmem:[%s967 + $0x70] sm:$0xff]
    %v983 = vld [vmem:[%s967 + $0x78] sm:$0xff]
    %v984 = vld [vmem:[%s967 + $0x80] sm:$0xff]
    %v985 = vld [vmem:[%s967 + $0x88] sm:$0xff]
    %v986 = vsel %vm791, %v948, 0
    %v988 = vsel %vm791, %v952, 0
    %v990 = vsel %vm791, %v958, 0
    %v992 = vsel %vm791, %v962, 0
    %994 = vmatpush.msra.mxu0 %v983
    %995 = vmatpush.msra.mxu0 %v982
    %996 = vmatpush.msra.mxu0 %v981
    %997 = vmatpush.msra.mxu0 %v980
    %998 = vmatpush.msra.mxu0 %v979
    %999 = vmatpush.msra.mxu0 %v978
    %1000 = vmatpush.msra.mxu0 %v977
    %1001 = vmatpush.msra.mxu0 %v976
    %1002 = vmatpush.msra.mxu0 %v975
    %1003 = vmatpush.msra.mxu0 %v974
    %1004 = vmatpush.msra.mxu0 %v973
    %1005 = vmatpush.msra.mxu0 %v972
    %1006 = vmatpush.msra.mxu0 %v971
    %1007 = vmatpush.msra.mxu0 %v970
    %1008 = vmatpush.msra.mxu0 %v969
    %1009 = vmatpush.msra.mxu0 %v968
    %1010 = vmatmul.f32.gmra.mxu0 %v945
    %v1011 = vpop.f32.mrf.mxu0
    %v1012 = vadd.f32 0.0, %v1011
    %1013 = vmatmul.f32.gmra.mxu0 %v950
    %v1014 = vpop.f32.mrf.mxu0
    %v1015 = vadd.f32 0.0, %v1014
    %1016 = vmatmul.f32.gmra.mxu0 %v955
    %v1017 = vpop.f32.mrf.mxu0
    %v1018 = vadd.f32 0.0, %v1017
    %1019 = vmatmul.f32.gmra.mxu0 %v960
    %v1020 = vpop.f32.mrf.mxu0
    %v1021 = vadd.f32 0.0, %v1020
    %1022 = vdwg.mxu0
    %1023 = vmatpush.msra.mxu0 0.0
    %1024 = vmatpush.msra.mxu0 0.0
    %1025 = vmatpush.msra.mxu0 0.0
    %1026 = vmatpush.msra.mxu0 0.0
    %1027 = vmatpush.msra.mxu0 0.0
    %1028 = vmatpush.msra.mxu0 0.0
    %1029 = vmatpush.msra.mxu0 0.0
    %1030 = vmatpush.msra.mxu0 0.0
    %1031 = vmatpush.msra.mxu0 0.0
    %1032 = vmatpush.msra.mxu0 0.0
    %1033 = vmatpush.msra.mxu0 0.0
    %1034 = vmatpush.msra.mxu0 0.0
    %1035 = vmatpush.msra.mxu0 0.0
    %1036 = vmatpush.msra.mxu0 0.0
    %1037 = vmatpush.msra.mxu0 %v985
    %1038 = vmatpush.msra.mxu0 %v984
    %1039 = vmatmul.f32.gmra.mxu0 %v986
    %v1040 = vpop.f32.mrf.mxu0
    %v1041 = vadd.f32 %v1012, %v1040
    %1042 = vmatmul.f32.gmra.mxu0 %v988
    %v1043 = vpop.f32.mrf.mxu0
    %v1044 = vadd.f32 %v1015, %v1043
    %1045 = vmatmul.f32.gmra.mxu0 %v990
    %v1046 = vpop.f32.mrf.mxu0
    %v1047 = vadd.f32 %v1018, %v1046
    %1048 = vmatmul.f32.gmra.mxu0 %v992
    %v1049 = vpop.f32.mrf.mxu0
    %v1050 = vadd.f32 %v1021, %v1049
    %1051 = vdwg.mxu0
    %v1052 = vadd.f32 %v915, %v1041
    %v1053 = vadd.f32 %v918, %v1044
    %v1054 = vadd.f32 %v921, %v1047
    %v1055 = vadd.f32 %v924, %v1050
    %v1056 = vadd.f32 %v1052, %v1053
    %v1057 = vadd.f32 %v1056, %v1054
    %v1058 = vadd.f32 %v1057, %v1055
    %v1059 = vrot.slane %v1058, 4
    %v1060 = vadd.f32 %v1058, %v1059
    %v1061 = vrot.slane %v1060, 2
    %v1062 = vadd.f32 %v1060, %v1061
    %v1063 = vrot.slane %v1062, 1
    %v1064 = vadd.f32 %v1062, %v1063
    %v1065 = vmul.f32 %v1052, %v1052
    %v1066 = vmul.f32 %v1053, %v1053
    %v1067 = vmul.f32 %v1054, %v1054
    %v1068 = vmul.f32 %v1055, %v1055
    %v1069 = vadd.f32 %v1065, %v1066
    %v1070 = vadd.f32 %v1069, %v1067
    %v1071 = vadd.f32 %v1070, %v1068
    %v1072 = vrot.slane %v1071, 4
    %v1073 = vadd.f32 %v1071, %v1072
    %v1074 = vrot.slane %v1073, 2
    %v1075 = vadd.f32 %v1073, %v1074
    %v1076 = vrot.slane %v1075, 1
    %v1077 = vadd.f32 %v1075, %v1076
    %v1078 = vld [vmem:[%s7] sm:$0xff]
    %v1079 = vld [vmem:[%s7 + $0x8] sm:$0xff]
    %v1080 = vld [vmem:[%s7 + $0x10] sm:$0xff]
    %v1081 = vld [vmem:[%s7 + $0x18] sm:$0xff]
    %v1082 = vld [vmem:[%s7 + $0x20] sm:$0xff]
    %v1083 = vld [vmem:[%s7 + $0x28] sm:$0xff]
    %v1084 = vld [vmem:[%s7 + $0x30] sm:$0xff]
    %v1085 = vld [vmem:[%s7 + $0x38] sm:$0xff]
    %v1086 = vld [vmem:[%s7 + $0x40] sm:$0xff]
    %v1087 = vld [vmem:[%s7 + $0x48] sm:$0xff]
    %v1088 = vld [vmem:[%s7 + $0x50] sm:$0xff]
    %v1089 = vld [vmem:[%s7 + $0x58] sm:$0xff]
    %v1090 = vld [vmem:[%s7 + $0x60] sm:$0xff]
    %v1091 = vld [vmem:[%s7 + $0x68] sm:$0xff]
    %v1092 = vld [vmem:[%s7 + $0x70] sm:$0xff]
    %v1093 = vld [vmem:[%s7 + $0x78] sm:$0xff]
    %1094 = vmatpush.msra.mxu0 %v1093
    %1095 = vmatpush.msra.mxu0 %v1092
    %1096 = vmatpush.msra.mxu0 %v1091
    %1097 = vmatpush.msra.mxu0 %v1090
    %1098 = vmatpush.msra.mxu0 %v1089
    %1099 = vmatpush.msra.mxu0 %v1088
    %1100 = vmatpush.msra.mxu0 %v1087
    %1101 = vmatpush.msra.mxu0 %v1086
    %1102 = vmatpush.msra.mxu0 %v1085
    %1103 = vmatpush.msra.mxu0 %v1084
    %1104 = vmatpush.msra.mxu0 %v1083
    %1105 = vmatpush.msra.mxu0 %v1082
    %1106 = vmatpush.msra.mxu0 %v1081
    %1107 = vmatpush.msra.mxu0 %v1080
    %1108 = vmatpush.msra.mxu0 %v1079
    %1109 = vmatpush.msra.mxu0 %v1078
    %1110 = vmatmul.f32.gmra.mxu0 %v1064
    %v1111 = vpop.f32.mrf.mxu0
    %v1112 = vadd.f32 0.0, %v1111
    %1113 = vdwg.mxu0
    %1114 = vmatpush.msra.mxu0 %v1093
    %1115 = vmatpush.msra.mxu0 %v1092
    %1116 = vmatpush.msra.mxu0 %v1091
    %1117 = vmatpush.msra.mxu0 %v1090
    %1118 = vmatpush.msra.mxu0 %v1089
    %1119 = vmatpush.msra.mxu0 %v1088
    %1120 = vmatpush.msra.mxu0 %v1087
    %1121 = vmatpush.msra.mxu0 %v1086
    %1122 = vmatpush.msra.mxu0 %v1085
    %1123 = vmatpush.msra.mxu0 %v1084
    %1124 = vmatpush.msra.mxu0 %v1083
    %1125 = vmatpush.msra.mxu0 %v1082
    %1126 = vmatpush.msra.mxu0 %v1081
    %1127 = vmatpush.msra.mxu0 %v1080
    %1128 = vmatpush.msra.mxu0 %v1079
    %1129 = vmatpush.msra.mxu0 %v1078
    %1130 = vmatmul.f32.gmra.mxu0 %v1077
    %v1131 = vpop.f32.mrf.mxu0
    %v1132 = vadd.f32 0.0, %v1131
    %1133 = vdwg.mxu0
    %v1134 = vmul.f32 %v1112, 0.001953125
    %v1135 = vmul.f32 %v1132, 0.001953125
    %v1136 = vmul.f32 %v1134, %v1134
    %v1137 = vsub.f32 %v1135, %v1136
    %v1138 = vld [vmem:[%s5] sm:$0x1]
    %v1139 = vadd.f32 %v1137, 1e-05
    %v1140 = vrsqrt.pop %v1139
    %v1141 = vmul.f32 %v1140, %v1139
    %v1142 = vmul.f32 %v1141, %v1140
    %v1143 = vmul.f32 0.5, %v1142
    %v1144 = vsub.f32 1.5, %v1143
    %v1145 = vmul.f32 %v1140, %v1144
    %vm1146 = vweird.f32 %v1139
    %vm1147 = vweird.f32 %v1140
    %vm1148 = vmor %vm1146, %vm1147
    %v1149 = vsel %vm1148, %v1140, %v1145
    %v1150 = vmul.f32 %v1138, %v1149
    %v1151 = vld [vmem:[%s6] sm:$0x1]
    %v1152 = vmul.f32 %v1134, %v1150
    %v1153 = vsub.f32 %v1151, %v1152
    %v1154 = vld [vmem:[%s8] sm:$0xff]
    %v1156 = vsel %vm385, %v1150, 0
    %1158 = vmatpush.msra.mxu0 0.0
    %1159 = vmatpush.msra.mxu0 0.0
    %1160 = vmatpush.msra.mxu0 0.0
    %1161 = vmatpush.msra.mxu0 0.0
    %1162 = vmatpush.msra.mxu0 0.0
    %1163 = vmatpush.msra.mxu0 0.0
    %1164 = vmatpush.msra.mxu0 0.0
    %1165 = vmatpush.msra.mxu0 0.0
    %1166 = vmatpush.msra.mxu0 0.0
    %1167 = vmatpush.msra.mxu0 0.0
    %1168 = vmatpush.msra.mxu0 0.0
    %1169 = vmatpush.msra.mxu0 0.0
    %1170 = vmatpush.msra.mxu0 0.0
    %1171 = vmatpush.msra.mxu0 0.0
    %1172 = vmatpush.msra.mxu0 0.0
    %1173 = vmatpush.msra.mxu0 %v1154
    %1174 = vmatmul.f32.gmra.mxu0 %v1156
    %v1175 = vpop.f32.mrf.mxu0
    %v1176 = vadd.f32 0.0, %v1175
    %1177 = vdwg.mxu0
    %v1179 = vsel %vm385, %v1153, 0
    %1181 = vmatpush.msra.mxu0 0.0
    %1182 = vmatpush.msra.mxu0 0.0
    %1183 = vmatpush.msra.mxu0 0.0
    %1184 = vmatpush.msra.mxu0 0.0
    %1185 = vmatpush.msra.mxu0 0.0
    %1186 = vmatpush.msra.mxu0 0.0
    %1187 = vmatpush.msra.mxu0 0.0
    %1188 = vmatpush.msra.mxu0 0.0
    %1189 = vmatpush.msra.mxu0 0.0
    %1190 = vmatpush.msra.mxu0 0.0
    %1191 = vmatpush.msra.mxu0 0.0
    %1192 = vmatpush.msra.mxu0 0.0
    %1193 = vmatpush.msra.mxu0 0.0
    %1194 = vmatpush.msra.mxu0 0.0
    %1195 = vmatpush.msra.mxu0 0.0
    %1196 = vmatpush.msra.mxu0 %v1154
    %1197 = vmatmul.f32.gmra.mxu0 %v1179
    %v1198 = vpop.f32.mrf.mxu0
    %v1199 = vadd.f32 0.0, %v1198
    %1200 = vdwg.mxu0
    %v1201 = vperm.slane %v1176, 0
    %v1202 = vmul.f32 %v1052, %v1201
    %v1203 = vmul.f32 %v1053, %v1201
    %v1204 = vmul.f32 %v1054, %v1201
    %v1205 = vmul.f32 %v1055, %v1201
    %v1206 = vperm.slane %v1199, 0
    %v1207 = vadd.f32 %v1202, %v1206
    %v1208 = vadd.f32 %v1203, %v1206
    %v1209 = vadd.f32 %v1204, %v1206
    %v1210 = vadd.f32 %v1205, %v1206
    %v1211 = vmul.f32 %v1207, 0.5
    %v1212 = vmul.f32 %v1208, 0.5
    %v1213 = vmul.f32 %v1209, 0.5
    %v1214 = vmul.f32 %v1210, 0.5
    %v1215 = vmul.f32 %v1207, %v452
    %v1216 = vmul.f32 %v1208, %v452
    %v1217 = vmul.f32 %v1209, %v452
    %v1218 = vmul.f32 %v1210, %v452
    %v1219 = vmul.f32 %v1215, %v1215
    %v1220 = vmin.f32 16.0, %v1219
    %v1221 = vmul.f32 %v1220, 2.1237322e-06
    %v1222 = vadd.f32 %v1221, 0.00028619796
    %v1223 = vmul.f32 %v1220, %v1222
    %v1224 = vadd.f32 %v1223, 0.0036580483
    %v1225 = vmul.f32 %v1220, %v1224
    %v1226 = vadd.f32 %v1225, 0.05243302
    %v1227 = vmul.f32 %v1220, %v1226
    %v1228 = vadd.f32 %v1227, 0.18741608
    %v1229 = vmul.f32 %v1220, %v1228
    %v1230 = vadd.f32 %v1229, 1.1283791
    %v1231 = vmul.f32 %v1215, %v1230
    %v1232 = vmul.f32 %v1220, 3.8918573e-05
    %v1233 = vadd.f32 %v1232, 0.001143296
    %v1234 = vmul.f32 %v1220, %v1233
    %v1235 = vadd.f32 %v1234, 0.014752088
    %v1236 = vmul.f32 %v1220, %v1235
    %v1237 = vadd.f32 %v1236, 0.112945676
    %v1238 = vmul.f32 %v1220, %v1237
    %v1239 = vadd.f32 %v1238, 0.4994258
    %v1240 = vmul.f32 %v1220, %v1239
    %v1241 = vadd.f32 %v1240, 1.0
    %v1242 = vrcp.pop %v1241
    %v1243 = vmul.f32 %v1241, %v1242
    %v1244 = vsub.f32 1.0, %v1243
    %v1245 = vmul.f32 %v1242, %v1244
    %v1246 = vadd.f32 %v1242, %v1245
    %vm1247 = vweird.f32 %v1241
    %vm1248 = vweird.f32 %v1242
    %vm1249 = vmor %vm1247, %vm1248
    %v1250 = vsel %vm1249, %v1242, %v1246
    %v1251 = vand.u32 2147483647, %v1241
    %vm1252 = vcmp.eq.f32.partialorder %v1251, 8.507059e+37
    %v1253 = vand.u32 %v1241, 2147483648
    %v1254 = vor.u32 1.1754944e-38, %v1253
    %v1255 = vsel %vm1252, %v1254, %v1250
    %v1256 = vmul.f32 %v1231, %v1255
    %v1257 = vmin.f32 %v1256, 1.0
    %v1258 = vmax.f32 %v1257, -1.0
    %v1259 = vmul.f32 %v1216, %v1216
    %v1260 = vmin.f32 16.0, %v1259
    %v1261 = vmul.f32 %v1260, 2.1237322e-06
    %v1262 = vadd.f32 %v1261, 0.00028619796
    %v1263 = vmul.f32 %v1260, %v1262
    %v1264 = vadd.f32 %v1263, 0.0036580483
    %v1265 = vmul.f32 %v1260, %v1264
    %v1266 = vadd.f32 %v1265, 0.05243302
    %v1267 = vmul.f32 %v1260, %v1266
    %v1268 = vadd.f32 %v1267, 0.18741608
    %v1269 = vmul.f32 %v1260, %v1268
    %v1270 = vadd.f32 %v1269, 1.1283791
    %v1271 = vmul.f32 %v1216, %v1270
    %v1272 = vmul.f32 %v1260, 3.8918573e-05
    %v1273 = vadd.f32 %v1272, 0.001143296
    %v1274 = vmul.f32 %v1260, %v1273
    %v1275 = vadd.f32 %v1274, 0.014752088
    %v1276 = vmul.f32 %v1260, %v1275
    %v1277 = vadd.f32 %v1276, 0.112945676
    %v1278 = vmul.f32 %v1260, %v1277
    %v1279 = vadd.f32 %v1278, 0.4994258
    %v1280 = vmul.f32 %v1260, %v1279
    %v1281 = vadd.f32 %v1280, 1.0
    %v1282 = vrcp.pop %v1281
    %v1283 = vmul.f32 %v1281, %v1282
    %v1284 = vsub.f32 1.0, %v1283
    %v1285 = vmul.f32 %v1282, %v1284
    %v1286 = vadd.f32 %v1282, %v1285
    %vm1287 = vweird.f32 %v1281
    %vm1288 = vweird.f32 %v1282
    %vm1289 = vmor %vm1287, %vm1288
    %v1290 = vsel %vm1289, %v1282, %v1286
    %v1291 = vand.u32 2147483647, %v1281
    %vm1292 = vcmp.eq.f32.partialorder %v1291, 8.507059e+37
    %v1293 = vand.u32 %v1281, 2147483648
    %v1294 = vor.u32 1.1754944e-38, %v1293
    %v1295 = vsel %vm1292, %v1294, %v1290
    %v1296 = vmul.f32 %v1271, %v1295
    %v1297 = vmin.f32 %v1296, 1.0
    %v1298 = vmax.f32 %v1297, -1.0
    %v1299 = vmul.f32 %v1217, %v1217
    %v1300 = vmin.f32 16.0, %v1299
    %v1301 = vmul.f32 %v1300, 2.1237322e-06
    %v1302 = vadd.f32 %v1301, 0.00028619796
    %v1303 = vmul.f32 %v1300, %v1302
    %v1304 = vadd.f32 %v1303, 0.0036580483
    %v1305 = vmul.f32 %v1300, %v1304
    %v1306 = vadd.f32 %v1305, 0.05243302
    %v1307 = vmul.f32 %v1300, %v1306
    %v1308 = vadd.f32 %v1307, 0.18741608
    %v1309 = vmul.f32 %v1300, %v1308
    %v1310 = vadd.f32 %v1309, 1.1283791
    %v1311 = vmul.f32 %v1217, %v1310
    %v1312 = vmul.f32 %v1300, 3.8918573e-05
    %v1313 = vadd.f32 %v1312, 0.001143296
    %v1314 = vmul.f32 %v1300, %v1313
    %v1315 = vadd.f32 %v1314, 0.014752088
    %v1316 = vmul.f32 %v1300, %v1315
    %v1317 = vadd.f32 %v1316, 0.112945676
    %v1318 = vmul.f32 %v1300, %v1317
    %v1319 = vadd.f32 %v1318, 0.4994258
    %v1320 = vmul.f32 %v1300, %v1319
    %v1321 = vadd.f32 %v1320, 1.0
    %v1322 = vrcp.pop %v1321
    %v1323 = vmul.f32 %v1321, %v1322
    %v1324 = vsub.f32 1.0, %v1323
    %v1325 = vmul.f32 %v1322, %v1324
    %v1326 = vadd.f32 %v1322, %v1325
    %vm1327 = vweird.f32 %v1321
    %vm1328 = vweird.f32 %v1322
    %vm1329 = vmor %vm1327, %vm1328
    %v1330 = vsel %vm1329, %v1322, %v1326
    %v1331 = vand.u32 2147483647, %v1321
    %vm1332 = vcmp.eq.f32.partialorder %v1331, 8.507059e+37
    %v1333 = vand.u32 %v1321, 2147483648
    %v1334 = vor.u32 1.1754944e-38, %v1333
    %v1335 = vsel %vm1332, %v1334, %v1330
    %v1336 = vmul.f32 %v1311, %v1335
    %v1337 = vmin.f32 %v1336, 1.0
    %v1338 = vmax.f32 %v1337, -1.0
    %v1339 = vmul.f32 %v1218, %v1218
    %v1340 = vmin.f32 16.0, %v1339
    %v1341 = vmul.f32 %v1340, 2.1237322e-06
    %v1342 = vadd.f32 %v1341, 0.00028619796
    %v1343 = vmul.f32 %v1340, %v1342
    %v1344 = vadd.f32 %v1343, 0.0036580483
    %v1345 = vmul.f32 %v1340, %v1344
    %v1346 = vadd.f32 %v1345, 0.05243302
    %v1347 = vmul.f32 %v1340, %v1346
    %v1348 = vadd.f32 %v1347, 0.18741608
    %v1349 = vmul.f32 %v1340, %v1348
    %v1350 = vadd.f32 %v1349, 1.1283791
    %v1351 = vmul.f32 %v1218, %v1350
    %v1352 = vmul.f32 %v1340, 3.8918573e-05
    %v1353 = vadd.f32 %v1352, 0.001143296
    %v1354 = vmul.f32 %v1340, %v1353
    %v1355 = vadd.f32 %v1354, 0.014752088
    %v1356 = vmul.f32 %v1340, %v1355
    %v1357 = vadd.f32 %v1356, 0.112945676
    %v1358 = vmul.f32 %v1340, %v1357
    %v1359 = vadd.f32 %v1358, 0.4994258
    %v1360 = vmul.f32 %v1340, %v1359
    %v1361 = vadd.f32 %v1360, 1.0
    %v1362 = vrcp.pop %v1361
    %v1363 = vmul.f32 %v1361, %v1362
    %v1364 = vsub.f32 1.0, %v1363
    %v1365 = vmul.f32 %v1362, %v1364
    %v1366 = vadd.f32 %v1362, %v1365
    %vm1367 = vweird.f32 %v1361
    %vm1368 = vweird.f32 %v1362
    %vm1369 = vmor %vm1367, %vm1368
    %v1370 = vsel %vm1369, %v1362, %v1366
    %v1371 = vand.u32 2147483647, %v1361
    %vm1372 = vcmp.eq.f32.partialorder %v1371, 8.507059e+37
    %v1373 = vand.u32 %v1361, 2147483648
    %v1374 = vor.u32 1.1754944e-38, %v1373
    %v1375 = vsel %vm1372, %v1374, %v1370
    %v1376 = vmul.f32 %v1351, %v1375
    %v1377 = vmin.f32 %v1376, 1.0
    %v1378 = vmax.f32 %v1377, -1.0
    %v1379 = vadd.f32 %v1258, 1.0
    %v1380 = vadd.f32 %v1298, 1.0
    %v1381 = vadd.f32 %v1338, 1.0
    %v1382 = vadd.f32 %v1378, 1.0
    %v1383 = vmul.f32 %v1211, %v1379
    %v1384 = vmul.f32 %v1212, %v1380
    %v1385 = vmul.f32 %v1213, %v1381
    %v1386 = vmul.f32 %v1214, %v1382
    %v1387 = vld [vmem:[%s0] sm:$0xff]
    %v1388 = vld [vmem:[%s0 + $0x8] sm:$0xff]
    %v1389 = vld [vmem:[%s0 + $0x10] sm:$0xff]
    %v1390 = vld [vmem:[%s0 + $0x18] sm:$0xff]
    %v1391 = vld [vmem:[%s9] sm:$0xff]
    %v1392 = vld [vmem:[%s9 + $0x8] sm:$0xff]
    %v1393 = vld [vmem:[%s9 + $0x10] sm:$0xff]
    %v1394 = vld [vmem:[%s9 + $0x18] sm:$0xff]
    %v1395 = vld [vmem:[%s9 + $0x20] sm:$0xff]
    %v1396 = vld [vmem:[%s9 + $0x28] sm:$0xff]
    %v1397 = vld [vmem:[%s9 + $0x30] sm:$0xff]
    %v1398 = vld [vmem:[%s9 + $0x38] sm:$0xff]
    %v1399 = vld [vmem:[%s10] sm:$0x1]
    %v1401 = vperm.slane %v1399, 0
    %vm1403 = vcmask 523264
    %v1405 = vsel %vm1403, %v1387, 0
    %v1408 = vsel %vm1403, %v1388, 0
    %v1411 = vsel %vm1403, %v1389, 0
    %v1414 = vsel %vm1403, %v1390, 0
    %1416 = vmatpush.msra.mxu0 0.0
    %1417 = vmatpush.msra.mxu0 0.0
    %1418 = vmatpush.msra.mxu0 0.0
    %1419 = vmatpush.msra.mxu0 0.0
    %1420 = vmatpush.msra.mxu0 0.0
    %1421 = vmatpush.msra.mxu0 0.0
    %1422 = vmatpush.msra.mxu0 0.0
    %1423 = vmatpush.msra.mxu0 0.0
    %1424 = vmatpush.msra.mxu0 %v1398
    %1425 = vmatpush.msra.mxu0 %v1397
    %1426 = vmatpush.msra.mxu0 %v1396
    %1427 = vmatpush.msra.mxu0 %v1395
    %1428 = vmatpush.msra.mxu0 %v1394
    %1429 = vmatpush.msra.mxu0 %v1393
    %1430 = vmatpush.msra.mxu0 %v1392
    %1431 = vmatpush.msra.mxu0 %v1391
    %1432 = vmatmul.f32.gmra.mxu0 %v1405
    %v1433 = vpop.f32.mrf.mxu0
    %v1434 = vadd.f32 %v1401, %v1433
    %1435 = vmatmul.f32.gmra.mxu0 %v1408
    %v1436 = vpop.f32.mrf.mxu0
    %v1437 = vadd.f32 %v1401, %v1436
    %1438 = vmatmul.f32.gmra.mxu0 %v1411
    %v1439 = vpop.f32.mrf.mxu0
    %v1440 = vadd.f32 %v1401, %v1439
    %1441 = vmatmul.f32.gmra.mxu0 %v1414
    %v1442 = vpop.f32.mrf.mxu0
    %v1443 = vadd.f32 %v1401, %v1442
    %1444 = vdwg.mxu0
    %v1445 = vadd.f32 %v1383, %v1434
    %v1446 = vadd.f32 %v1384, %v1437
    %v1447 = vadd.f32 %v1385, %v1440
    %v1448 = vadd.f32 %v1386, %v1443
    %1449 = vst [vmem:[#allocation9] sm:$0xff] %v1445
    %1450 = vst [vmem:[#allocation9 + $0x8] sm:$0xff] %v1446
    %1451 = vst [vmem:[#allocation9 + $0x10] sm:$0xff] %v1447
    %1452 = vst [vmem:[#allocation9 + $0x18] sm:$0xff] %v1448
    // Predicated region
    $region54: #{tpu_custom_call.1} parent=1 // pred_check
      _
    $region55: #{tpu_custom_call.1} parent=1 // pred_check_branch
      %1454 = sbr.rel (0) target = $region57
    $region56: #{tpu_custom_call.1} parent=1 // pred_region
      %1456 = vsyncadd [#allocation6], 0
      %s1457 = sshll.u32 [#allocation9], 4
      %s1458 = int_to_ptr.vmem [resolvable:$true] %s1457
      %s1459 = sshll.u32 %s11, 4
      %s1460 = int_to_ptr.hbm [resolvable:$true] %s1459
      %1465 = dma.vmem_to_hbm [thread:$0]  %s1458, 512, %s1460, [#allocation6], 128, 128, 8
    $region57: #{tpu_custom_call.1} parent=1 // pred_fallthru
      _
    // Predicated region
    $region58: #{tpu_custom_call.1} parent=1 // pred_check
      _
    $region59: #{tpu_custom_call.1} parent=1 // pred_check_branch
      %1467 = sbr.rel (0) target = $region61
    $region60: #{tpu_custom_call.1} parent=1 // pred_region
      %1469 = dma.done [#allocation6], 512
    $region61: #{tpu_custom_call.1} parent=1 // pred_fallthru
      _
    %1470 = vsyncpa [#allocation5], 1
    %1471 = vsyncpa [#allocation8], 1
    %1472 = vsyncpa [#allocation6], 1

</llo_original>
